<compile_context>
chip_gen: v5e
topology: v5e:2x2
jax: 0.10.0
libtpu: 0.0.40
codegen_flags: <defaults>
</compile_context>

<pallas_src>
import math

import numpy as np
import jax
import jax.numpy as jnp
from jax.experimental import pallas as pl
from jax.experimental.pallas import tpu as pltpu

SUBLANE = 8


def _round_up(x, m):
    return (x + m - 1) // m * m


def _gelu_erf(x):
    """Exact (erf) GELU via the Abramowitz-Stegun 7.1.26 erf polynomial
    (max abs error ~1.5e-7), using only ops with guaranteed Mosaic lowering."""
    z = x * 0.7071067811865476
    az = jnp.abs(z)
    t = 1.0 / (1.0 + 0.3275911 * az)
    poly = ((((1.061405429 * t - 1.453152027) * t + 1.421413741) * t
             - 0.284496736) * t + 0.254829592) * t
    erf_abs = 1.0 - poly * jnp.exp(-az * az)
    erf = jnp.where(z < 0.0, -erf_abs, erf_abs)
    return 0.5 * x * (1.0 + erf)


# ======================================================================
# Fused FeedForward Pallas kernel
# ======================================================================

def feedforward_pallas(params, xs):
    """xs = [x0, ..., x2] with x0 = xs[0], x2 = xs[-1], both (B, C, H, W)."""
    x0, x2 = xs[0], xs[-1]
    B, C, H, W = x2.shape
    HW = H * W
    hidden = params["in2_w"].shape[0]
    HP = _round_up(hidden, SUBLANE)          # sublane-padded hidden dim only

    # ---------------- weight preparation (tiny, folded by XLA) -----------
    # Hidden (sublane) rows are zero-padded; activation channel dims stay
    # at true C in HBM (block last/second-to-last dim == full array dim).
    w1 = params["in1_w"][:, :, 0, 0]                                   # (hidden, C)
    w1p = jnp.zeros((HP, C), jnp.bfloat16).at[:hidden].set(w1.astype(jnp.bfloat16))
    w2p = jnp.zeros((HP, C), jnp.bfloat16).at[:hidden].set(
        params["in2_w"].astype(jnp.bfloat16))
    wop = jnp.zeros((C, HP), jnp.bfloat16).at[:, :hidden].set(
        params["out_w"].astype(jnp.bfloat16))
    dwp = jnp.zeros((HP, 9), jnp.float32).at[:hidden].set(
        params["dw_w"][:, 0].reshape(hidden, 9))                       # f32 taps

    # ---------------- constant boundary masks for the 9 taps -------------
    # mask[t, p] = 1 iff the shifted source pixel (h+dy, w+dx) is in-bounds
    # (matches Conv2d padding=1 zero padding).  Host-built numpy constant.
    masks_np = np.zeros((9, HW), np.float32)
    for t in range(9):
        dy, dx = t // 3 - 1, t % 3 - 1
        m = np.zeros((H, W), np.float32)
        m[max(0, -dy):min(H, H - dy), max(0, -dx):min(W, W - dx)] = 1.0
        masks_np[t] = m.reshape(-1)
    masks = jnp.asarray(masks_np)

    # ---------------- activations: free reshapes only --------------------
    x0f = x0.reshape(B, C, HW)               # NCHW stays NCHW, spatial on lanes
    x2f = x2.reshape(B, C, HW)

    def kernel(x0_ref, x2_ref, w1_ref, w2_ref, wo_ref, dw_ref, mk_ref, o_ref):
        x0b = x0_ref[0].astype(jnp.bfloat16)                  # (C, HW)
        x2b = x2_ref[0].astype(jnp.bfloat16)                  # (C, HW)

        # ---- project_in1 (1x1 conv): ONE MXU matmul over the spatial map.
        h0 = jnp.dot(w1_ref[...], x0b,
                     preferred_element_type=jnp.float32)      # (HP, HW) f32

        # ---- depthwise 3x3: lane rolls (XLU) + masked f32 VPU FMA,
        #      accumulated in a register value (no VMEM scratch). ----
        x1 = None
        for t in range(9):
            dy, dx = t // 3 - 1, t % 3 - 1
            off = dy * W + dx                                 # source = p + off
            sh = h0 if off == 0 else pltpu.roll(h0, shift=(-off) % HW, axis=1)
            coeff = dw_ref[:, t:t + 1] * mk_ref[t:t + 1, :]   # (HP,1)x(1,HW)
            term = sh * coeff
            x1 = term if x1 is None else x1 + term            # (HP, HW) f32

        # ---- project_in2 + fused gelu(x1) * x2 epilogue ----
        t2 = jnp.dot(w2_ref[...], x2b,
                     preferred_element_type=jnp.float32)      # (HP, HW) f32
        y = (_gelu_erf(x1) * t2).astype(jnp.bfloat16)         # (HP, HW) bf16

        # ---- project_out: (C, HP) @ (HP, HW) -> lane-dense (C, HW) store.
        o_ref[0] = jnp.dot(wo_ref[...], y,
                           preferred_element_type=jnp.float32).astype(o_ref.dtype)

    out = pl.pallas_call(
        kernel,
        out_shape=jax.ShapeDtypeStruct((B, C, HW), jnp.float32),
        grid=(B,),
        in_specs=[
            pl.BlockSpec((1, C, HW), lambda b: (b, 0, 0)),    # x0 (true C, no pad)
            pl.BlockSpec((1, C, HW), lambda b: (b, 0, 0)),    # x2
            pl.BlockSpec((HP, C), lambda b: (0, 0)),          # project_in1 weight
            pl.BlockSpec((HP, C), lambda b: (0, 0)),          # project_in2 weight
            pl.BlockSpec((C, HP), lambda b: (0, 0)),          # project_out weight
            pl.BlockSpec((HP, 9), lambda b: (0, 0)),          # depthwise taps (f32)
            pl.BlockSpec((9, HW), lambda b: (0, 0)),          # boundary masks
        ],
        out_specs=pl.BlockSpec((1, C, HW), lambda b: (b, 0, 0)),
        compiler_params=pltpu.CompilerParams(
            dimension_semantics=("parallel",)),
    )(x0f, x2f, w1p, w2p, wop, dwp, masks)

    return out.reshape(B, C, H, W)                            # free reshape, NCHW


# ======================================================================
# Pure-JAX reference (f32, matches the PyTorch module semantics)
# ======================================================================

def feedforward_ref(params, xs):
    x0, x2 = xs[0], xs[-1]
    B, C, H, W = x2.shape
    hidden = params["in2_w"].shape[0]
    x1 = jnp.einsum("bchw,oc->bohw", x0, params["in1_w"][:, :, 0, 0])
    xp = jnp.pad(x1, ((0, 0), (0, 0), (1, 1), (1, 1)))
    dwc = params["dw_w"]
    x1d = jnp.zeros_like(x1)
    for ky in range(3):
        for kx in range(3):
            x1d = x1d + xp[:, :, ky:ky + H, kx:kx + W] * dwc[:, 0, ky, kx][None, :, None, None]
    x1f = x1d.reshape(B, hidden, H * W).transpose(0, 2, 1)
    x2f = x2.reshape(B, C, H * W).transpose(0, 2, 1) @ params["in2_w"].T
    g = 0.5 * x1f * (1.0 + jax.lax.erf(x1f * 0.7071067811865476))
    y = (g * x2f) @ params["out_w"].T
    return y.transpose(0, 2, 1).reshape(B, C, H, W)


# ======================================================================
# Parameter init (deterministic, bias=False)
# ======================================================================

def init_feedforward(key, dim, ffn_expansion_factor):
    hidden = int(dim * ffn_expansion_factor)
    ks = jax.random.split(key, 4)

    def w(k, shape, fan_in):
        return (1.0 / math.sqrt(fan_in)) * jax.random.normal(k, shape, jnp.float32)

    return {
        "in1_w": w(ks[0], (hidden, dim, 1, 1), dim),   # project_in1 (1x1 conv)
        "in2_w": w(ks[1], (hidden, dim), dim),         # project_in2 (Linear)
        "dw_w":  w(ks[2], (hidden, 1, 3, 3), 9),       # depthwise 3x3
        "out_w": w(ks[3], (dim, hidden), hidden),      # project_out (Linear)
    }


# ======================================================================
# Main
# ======================================================================

if __name__ == "__main__":
    B, DIM, H, W = 2, 16, 16, 16
    FFN_FACTOR = 2.6            # hidden = 41 (deliberately not aligned; padded to 48)

    key = jax.random.PRNGKey(0)
    kp, k0, k1 = jax.random.split(key, 3)
    params = init_feedforward(kp, DIM, FFN_FACTOR)

    x0 = jax.random.normal(k0, (B, DIM, H, W), jnp.float32)   # x[0]
    x2 = jax.random.normal(k1, (B, DIM, H, W), jnp.float32)   # x[-1]

    fwd = jax.jit(lambda a, b: feedforward_pallas(params, [a, b]))
    out = jax.block_until_ready(fwd(x0, x2))

    ref = jax.block_until_ready(feedforward_ref(params, [x0, x2]))

    assert out.shape == (B, DIM, H, W)
    assert bool(jnp.all(jnp.isfinite(out)))
    # bf16 MXU inputs with f32 accumulation (taps applied in f32) -> small
    # absolute deviation from the all-f32 reference is expected.
    err = float(jnp.max(jnp.abs(out - ref)))
    assert err < 1.5e-1, f"max abs err vs f32 reference: {err}"
    print("KERNEL_OK")
</pallas_src>

<mosaic_0001>
module attributes {stable_mosaic.version = 11 : i64} {
  func.func @kernel(%arg0: i32, %arg1: memref<1x16x256xf32, #tpu.memory_space<vmem>>, %arg2: memref<1x16x256xf32, #tpu.memory_space<vmem>>, %arg3: memref<48x16xbf16, #tpu.memory_space<vmem>>, %arg4: memref<48x16xbf16, #tpu.memory_space<vmem>>, %arg5: memref<16x48xbf16, #tpu.memory_space<vmem>>, %arg6: memref<48x9xf32, #tpu.memory_space<vmem>>, %arg7: memref<9x256xf32, #tpu.memory_space<vmem>>, %arg8: memref<1x16x256xf32, #tpu.memory_space<vmem>>) attributes {dimension_semantics = [#tpu.dimension_semantics<parallel>], iteration_bounds = array<i64: 2>, scalar_prefetch = 0 : i64, scratch_operands = 0 : i64, tpu.core_type = #tpu.core_type<tc>, window_params = [{transform_indices = @transform_0, window_bounds = array<i64: 1, 16, 256>}, {transform_indices = @transform_1, window_bounds = array<i64: 1, 16, 256>}, {pipeline_mode = #tpu.pipeline_mode<synchronous>, transform_indices = @transform_2, window_bounds = array<i64: 48, 16>}, {pipeline_mode = #tpu.pipeline_mode<synchronous>, transform_indices = @transform_3, window_bounds = array<i64: 48, 16>}, {pipeline_mode = #tpu.pipeline_mode<synchronous>, transform_indices = @transform_4, window_bounds = array<i64: 16, 48>}, {pipeline_mode = #tpu.pipeline_mode<synchronous>, transform_indices = @transform_5, window_bounds = array<i64: 48, 9>}, {pipeline_mode = #tpu.pipeline_mode<synchronous>, transform_indices = @transform_6, window_bounds = array<i64: 9, 256>}, {transform_indices = @transform_7, window_bounds = array<i64: 1, 16, 256>}]} {
    %c0 = arith.constant 0 : index
    %c0_0 = arith.constant 0 : index
    %c0_1 = arith.constant 0 : index
    %0 = vector.load %arg1[%c0, %c0_0, %c0_1] : memref<1x16x256xf32, #tpu.memory_space<vmem>>, vector<1x16x256xf32>
    %1 = vector.shape_cast %0 : vector<1x16x256xf32> to vector<16x256xf32>
    %2 = arith.truncf %1 : vector<16x256xf32> to vector<16x256xbf16>
    %c0_2 = arith.constant 0 : index
    %c0_3 = arith.constant 0 : index
    %c0_4 = arith.constant 0 : index
    %3 = vector.load %arg2[%c0_2, %c0_3, %c0_4] : memref<1x16x256xf32, #tpu.memory_space<vmem>>, vector<1x16x256xf32>
    %4 = vector.shape_cast %3 : vector<1x16x256xf32> to vector<16x256xf32>
    %5 = arith.truncf %4 : vector<16x256xf32> to vector<16x256xbf16>
    %c0_5 = arith.constant 0 : index
    %c0_6 = arith.constant 0 : index
    %6 = vector.load %arg3[%c0_5, %c0_6] : memref<48x16xbf16, #tpu.memory_space<vmem>>, vector<48x16xbf16>
    %cst = arith.constant dense<0.000000e+00> : vector<48x256xf32>
    %7 = tpu.matmul %6, %2, %cst {dimension_numbers = #tpu.dot_dimension_numbers<[1], [0], [0], [1], [0, 0, 1, 1], [], []>} : vector<48x16xbf16>, vector<16x256xbf16>, vector<48x256xf32> -> vector<48x256xf32>
    %c17_i32 = arith.constant 17 : i32
    %8 = tpu.dynamic_rotate %7 by %c17_i32 dim 1 : vector<48x256xf32>, i32 -> vector<48x256xf32>
    %c0_7 = arith.constant 0 : index
    %c0_8 = arith.constant 0 : index
    %9 = vector.load %arg6[%c0_7, %c0_8] : memref<48x9xf32, #tpu.memory_space<vmem>>, vector<48x1xf32>
    %c0_9 = arith.constant 0 : index
    %c0_10 = arith.constant 0 : index
    %10 = vector.load %arg7[%c0_9, %c0_10] : memref<9x256xf32, #tpu.memory_space<vmem>>, vector<1x256xf32>
    %11 = vector.broadcast %9 : vector<48x1xf32> to vector<48x256xf32>
    %12 = vector.broadcast %10 : vector<1x256xf32> to vector<48x256xf32>
    %13 = arith.mulf %11, %12 : vector<48x256xf32>
    %14 = arith.mulf %8, %13 : vector<48x256xf32>
    %c16_i32 = arith.constant 16 : i32
    %15 = tpu.dynamic_rotate %7 by %c16_i32 dim 1 : vector<48x256xf32>, i32 -> vector<48x256xf32>
    %c0_11 = arith.constant 0 : index
    %c1 = arith.constant 1 : index
    %16 = vector.load %arg6[%c0_11, %c1] : memref<48x9xf32, #tpu.memory_space<vmem>>, vector<48x1xf32>
    %c1_12 = arith.constant 1 : index
    %c0_13 = arith.constant 0 : index
    %17 = vector.load %arg7[%c1_12, %c0_13] : memref<9x256xf32, #tpu.memory_space<vmem>>, vector<1x256xf32>
    %18 = vector.broadcast %16 : vector<48x1xf32> to vector<48x256xf32>
    %19 = vector.broadcast %17 : vector<1x256xf32> to vector<48x256xf32>
    %20 = arith.mulf %18, %19 : vector<48x256xf32>
    %21 = arith.mulf %15, %20 : vector<48x256xf32>
    %22 = arith.addf %14, %21 : vector<48x256xf32>
    %c15_i32 = arith.constant 15 : i32
    %23 = tpu.dynamic_rotate %7 by %c15_i32 dim 1 : vector<48x256xf32>, i32 -> vector<48x256xf32>
    %c0_14 = arith.constant 0 : index
    %c2 = arith.constant 2 : index
    %24 = vector.load %arg6[%c0_14, %c2] : memref<48x9xf32, #tpu.memory_space<vmem>>, vector<48x1xf32>
    %c2_15 = arith.constant 2 : index
    %c0_16 = arith.constant 0 : index
    %25 = vector.load %arg7[%c2_15, %c0_16] : memref<9x256xf32, #tpu.memory_space<vmem>>, vector<1x256xf32>
    %26 = vector.broadcast %24 : vector<48x1xf32> to vector<48x256xf32>
    %27 = vector.broadcast %25 : vector<1x256xf32> to vector<48x256xf32>
    %28 = arith.mulf %26, %27 : vector<48x256xf32>
    %29 = arith.mulf %23, %28 : vector<48x256xf32>
    %30 = arith.addf %22, %29 : vector<48x256xf32>
    %c1_i32 = arith.constant 1 : i32
    %31 = tpu.dynamic_rotate %7 by %c1_i32 dim 1 : vector<48x256xf32>, i32 -> vector<48x256xf32>
    %c0_17 = arith.constant 0 : index
    %c3 = arith.constant 3 : index
    %32 = vector.load %arg6[%c0_17, %c3] : memref<48x9xf32, #tpu.memory_space<vmem>>, vector<48x1xf32>
    %c3_18 = arith.constant 3 : index
    %c0_19 = arith.constant 0 : index
    %33 = vector.load %arg7[%c3_18, %c0_19] : memref<9x256xf32, #tpu.memory_space<vmem>>, vector<1x256xf32>
    %34 = vector.broadcast %32 : vector<48x1xf32> to vector<48x256xf32>
    %35 = vector.broadcast %33 : vector<1x256xf32> to vector<48x256xf32>
    %36 = arith.mulf %34, %35 : vector<48x256xf32>
    %37 = arith.mulf %31, %36 : vector<48x256xf32>
    %38 = arith.addf %30, %37 : vector<48x256xf32>
    %c0_20 = arith.constant 0 : index
    %c4 = arith.constant 4 : index
    %39 = vector.load %arg6[%c0_20, %c4] : memref<48x9xf32, #tpu.memory_space<vmem>>, vector<48x1xf32>
    %c4_21 = arith.constant 4 : index
    %c0_22 = arith.constant 0 : index
    %40 = vector.load %arg7[%c4_21, %c0_22] : memref<9x256xf32, #tpu.memory_space<vmem>>, vector<1x256xf32>
    %41 = vector.broadcast %39 : vector<48x1xf32> to vector<48x256xf32>
    %42 = vector.broadcast %40 : vector<1x256xf32> to vector<48x256xf32>
    %43 = arith.mulf %41, %42 : vector<48x256xf32>
    %44 = arith.mulf %7, %43 : vector<48x256xf32>
    %45 = arith.addf %38, %44 : vector<48x256xf32>
    %c255_i32 = arith.constant 255 : i32
    %46 = tpu.dynamic_rotate %7 by %c255_i32 dim 1 : vector<48x256xf32>, i32 -> vector<48x256xf32>
    %c0_23 = arith.constant 0 : index
    %c5 = arith.constant 5 : index
    %47 = vector.load %arg6[%c0_23, %c5] : memref<48x9xf32, #tpu.memory_space<vmem>>, vector<48x1xf32>
    %c5_24 = arith.constant 5 : index
    %c0_25 = arith.constant 0 : index
    %48 = vector.load %arg7[%c5_24, %c0_25] : memref<9x256xf32, #tpu.memory_space<vmem>>, vector<1x256xf32>
    %49 = vector.broadcast %47 : vector<48x1xf32> to vector<48x256xf32>
    %50 = vector.broadcast %48 : vector<1x256xf32> to vector<48x256xf32>
    %51 = arith.mulf %49, %50 : vector<48x256xf32>
    %52 = arith.mulf %46, %51 : vector<48x256xf32>
    %53 = arith.addf %45, %52 : vector<48x256xf32>
    %c241_i32 = arith.constant 241 : i32
    %54 = tpu.dynamic_rotate %7 by %c241_i32 dim 1 : vector<48x256xf32>, i32 -> vector<48x256xf32>
    %c0_26 = arith.constant 0 : index
    %c6 = arith.constant 6 : index
    %55 = vector.load %arg6[%c0_26, %c6] : memref<48x9xf32, #tpu.memory_space<vmem>>, vector<48x1xf32>
    %c6_27 = arith.constant 6 : index
    %c0_28 = arith.constant 0 : index
    %56 = vector.load %arg7[%c6_27, %c0_28] : memref<9x256xf32, #tpu.memory_space<vmem>>, vector<1x256xf32>
    %57 = vector.broadcast %55 : vector<48x1xf32> to vector<48x256xf32>
    %58 = vector.broadcast %56 : vector<1x256xf32> to vector<48x256xf32>
    %59 = arith.mulf %57, %58 : vector<48x256xf32>
    %60 = arith.mulf %54, %59 : vector<48x256xf32>
    %61 = arith.addf %53, %60 : vector<48x256xf32>
    %c240_i32 = arith.constant 240 : i32
    %62 = tpu.dynamic_rotate %7 by %c240_i32 dim 1 : vector<48x256xf32>, i32 -> vector<48x256xf32>
    %c0_29 = arith.constant 0 : index
    %c7 = arith.constant 7 : index
    %63 = vector.load %arg6[%c0_29, %c7] : memref<48x9xf32, #tpu.memory_space<vmem>>, vector<48x1xf32>
    %c7_30 = arith.constant 7 : index
    %c0_31 = arith.constant 0 : index
    %64 = vector.load %arg7[%c7_30, %c0_31] : memref<9x256xf32, #tpu.memory_space<vmem>>, vector<1x256xf32>
    %65 = vector.broadcast %63 : vector<48x1xf32> to vector<48x256xf32>
    %66 = vector.broadcast %64 : vector<1x256xf32> to vector<48x256xf32>
    %67 = arith.mulf %65, %66 : vector<48x256xf32>
    %68 = arith.mulf %62, %67 : vector<48x256xf32>
    %69 = arith.addf %61, %68 : vector<48x256xf32>
    %c239_i32 = arith.constant 239 : i32
    %70 = tpu.dynamic_rotate %7 by %c239_i32 dim 1 : vector<48x256xf32>, i32 -> vector<48x256xf32>
    %c0_32 = arith.constant 0 : index
    %c8 = arith.constant 8 : index
    %71 = vector.load %arg6[%c0_32, %c8] : memref<48x9xf32, #tpu.memory_space<vmem>>, vector<48x1xf32>
    %c8_33 = arith.constant 8 : index
    %c0_34 = arith.constant 0 : index
    %72 = vector.load %arg7[%c8_33, %c0_34] : memref<9x256xf32, #tpu.memory_space<vmem>>, vector<1x256xf32>
    %73 = vector.broadcast %71 : vector<48x1xf32> to vector<48x256xf32>
    %74 = vector.broadcast %72 : vector<1x256xf32> to vector<48x256xf32>
    %75 = arith.mulf %73, %74 : vector<48x256xf32>
    %76 = arith.mulf %70, %75 : vector<48x256xf32>
    %77 = arith.addf %69, %76 : vector<48x256xf32>
    %c0_35 = arith.constant 0 : index
    %c0_36 = arith.constant 0 : index
    %78 = vector.load %arg4[%c0_35, %c0_36] : memref<48x16xbf16, #tpu.memory_space<vmem>>, vector<48x16xbf16>
    %cst_37 = arith.constant dense<0.000000e+00> : vector<48x256xf32>
    %79 = tpu.matmul %78, %5, %cst_37 {dimension_numbers = #tpu.dot_dimension_numbers<[1], [0], [0], [1], [0, 0, 1, 1], [], []>} : vector<48x16xbf16>, vector<16x256xbf16>, vector<48x256xf32> -> vector<48x256xf32>
    %cst_38 = arith.constant 0.707106769 : f32
    %80 = vector.broadcast %cst_38 : f32 to vector<48x256xf32>
    %81 = arith.mulf %77, %80 : vector<48x256xf32>
    %82 = math.absf %81 : vector<48x256xf32>
    %cst_39 = arith.constant 0.327591091 : f32
    %83 = vector.broadcast %cst_39 : f32 to vector<48x256xf32>
    %84 = arith.mulf %83, %82 : vector<48x256xf32>
    %cst_40 = arith.constant 1.000000e+00 : f32
    %85 = vector.broadcast %cst_40 : f32 to vector<48x256xf32>
    %86 = arith.addf %85, %84 : vector<48x256xf32>
    %cst_41 = arith.constant 1.000000e+00 : f32
    %87 = vector.broadcast %cst_41 : f32 to vector<48x256xf32>
    %88 = arith.divf %87, %86 : vector<48x256xf32>
    %cst_42 = arith.constant 1.06140542 : f32
    %89 = vector.broadcast %cst_42 : f32 to vector<48x256xf32>
    %90 = arith.mulf %89, %88 : vector<48x256xf32>
    %cst_43 = arith.constant 1.45315206 : f32
    %91 = vector.broadcast %cst_43 : f32 to vector<48x256xf32>
    %92 = arith.subf %90, %91 : vector<48x256xf32>
    %93 = arith.mulf %92, %88 : vector<48x256xf32>
    %cst_44 = arith.constant 1.42141378 : f32
    %94 = vector.broadcast %cst_44 : f32 to vector<48x256xf32>
    %95 = arith.addf %93, %94 : vector<48x256xf32>
    %96 = arith.mulf %95, %88 : vector<48x256xf32>
    %cst_45 = arith.constant 0.284496725 : f32
    %97 = vector.broadcast %cst_45 : f32 to vector<48x256xf32>
    %98 = arith.subf %96, %97 : vector<48x256xf32>
    %99 = arith.mulf %98, %88 : vector<48x256xf32>
    %cst_46 = arith.constant 0.254829586 : f32
    %100 = vector.broadcast %cst_46 : f32 to vector<48x256xf32>
    %101 = arith.addf %99, %100 : vector<48x256xf32>
    %102 = arith.mulf %101, %88 : vector<48x256xf32>
    %cst_47 = arith.constant 0.000000e+00 : f32
    %103 = vector.broadcast %cst_47 : f32 to vector<48x256xf32>
    %104 = arith.subf %103, %82 : vector<48x256xf32>
    %105 = arith.mulf %104, %82 : vector<48x256xf32>
    %106 = math.exp %105 : vector<48x256xf32>
    %107 = arith.mulf %102, %106 : vector<48x256xf32>
    %cst_48 = arith.constant 1.000000e+00 : f32
    %108 = vector.broadcast %cst_48 : f32 to vector<48x256xf32>
    %109 = arith.subf %108, %107 : vector<48x256xf32>
    %cst_49 = arith.constant 0.000000e+00 : f32
    %110 = vector.broadcast %cst_49 : f32 to vector<48x256xf32>
    %111 = arith.cmpf olt, %81, %110 : vector<48x256xf32>
    %cst_50 = arith.constant 0.000000e+00 : f32
    %112 = vector.broadcast %cst_50 : f32 to vector<48x256xf32>
    %113 = arith.subf %112, %109 : vector<48x256xf32>
    %114 = arith.select %111, %113, %109 : vector<48x256xi1>, vector<48x256xf32>
    %cst_51 = arith.constant 5.000000e-01 : f32
    %115 = vector.broadcast %cst_51 : f32 to vector<48x256xf32>
    %116 = arith.mulf %115, %77 : vector<48x256xf32>
    %cst_52 = arith.constant 1.000000e+00 : f32
    %117 = vector.broadcast %cst_52 : f32 to vector<48x256xf32>
    %118 = arith.addf %117, %114 : vector<48x256xf32>
    %119 = arith.mulf %116, %118 : vector<48x256xf32>
    %120 = arith.mulf %119, %79 : vector<48x256xf32>
    %121 = arith.truncf %120 : vector<48x256xf32> to vector<48x256xbf16>
    %c0_53 = arith.constant 0 : index
    %c0_54 = arith.constant 0 : index
    %122 = vector.load %arg5[%c0_53, %c0_54] : memref<16x48xbf16, #tpu.memory_space<vmem>>, vector<16x48xbf16>
    %cst_55 = arith.constant dense<0.000000e+00> : vector<16x256xf32>
    %123 = tpu.matmul %122, %121, %cst_55 {dimension_numbers = #tpu.dot_dimension_numbers<[1], [0], [0], [1], [0, 0, 1, 1], [], []>} : vector<16x48xbf16>, vector<48x256xbf16>, vector<16x256xf32> -> vector<16x256xf32>
    %c0_56 = arith.constant 0 : index
    %c0_57 = arith.constant 0 : index
    %c0_58 = arith.constant 0 : index
    %124 = vector.load %arg8[%c0_56, %c0_57, %c0_58] : memref<1x16x256xf32, #tpu.memory_space<vmem>>, vector<1x16x256xf32>
    %125 = vector.shape_cast %124 : vector<1x16x256xf32> to vector<16x256xf32>
    %126 = vector.shape_cast %123 : vector<16x256xf32> to vector<1x16x256xf32>
    tpu.vector_store %arg8[%c0_56, %c0_57, %c0_58], %126 {strides = array<i32>} : memref<1x16x256xf32, #tpu.memory_space<vmem>>, vector<1x16x256xf32>,
    return
  }
  func.func @transform_0(%arg0: i32) -> (i32, i32, i32) {
    %c0_i32 = arith.constant 0 : i32
    %c0_i32_0 = arith.constant 0 : i32
    %c0_i32_1 = arith.constant 0 : i32
    return %arg0, %c0_i32, %c0_i32_0 : i32, i32, i32
  }
  func.func @transform_1(%arg0: i32) -> (i32, i32, i32) {
    %c0_i32 = arith.constant 0 : i32
    %c0_i32_0 = arith.constant 0 : i32
    %c0_i32_1 = arith.constant 0 : i32
    return %arg0, %c0_i32, %c0_i32_0 : i32, i32, i32
  }
  func.func @transform_2(%arg0: i32) -> (i32, i32) {
    %c0_i32 = arith.constant 0 : i32
    %c0_i32_0 = arith.constant 0 : i32
    %c0_i32_1 = arith.constant 0 : i32
    return %c0_i32, %c0_i32_0 : i32, i32
  }
  func.func @transform_3(%arg0: i32) -> (i32, i32) {
    %c0_i32 = arith.constant 0 : i32
    %c0_i32_0 = arith.constant 0 : i32
    %c0_i32_1 = arith.constant 0 : i32
    return %c0_i32, %c0_i32_0 : i32, i32
  }
  func.func @transform_4(%arg0: i32) -> (i32, i32) {
    %c0_i32 = arith.constant 0 : i32
    %c0_i32_0 = arith.constant 0 : i32
    %c0_i32_1 = arith.constant 0 : i32
    return %c0_i32, %c0_i32_0 : i32, i32
  }
  func.func @transform_5(%arg0: i32) -> (i32, i32) {
    %c0_i32 = arith.constant 0 : i32
    %c0_i32_0 = arith.constant 0 : i32
    %c0_i32_1 = arith.constant 0 : i32
    return %c0_i32, %c0_i32_0 : i32, i32
  }
  func.func @transform_6(%arg0: i32) -> (i32, i32) {
    %c0_i32 = arith.constant 0 : i32
    %c0_i32_0 = arith.constant 0 : i32
    %c0_i32_1 = arith.constant 0 : i32
    return %c0_i32, %c0_i32_0 : i32, i32
  }
  func.func @transform_7(%arg0: i32) -> (i32, i32, i32) {
    %c0_i32 = arith.constant 0 : i32
    %c0_i32_0 = arith.constant 0 : i32
    %c0_i32_1 = arith.constant 0 : i32
    return %arg0, %c0_i32, %c0_i32_0 : i32, i32, i32
  }
}

</mosaic_0001>

<llo_original>
// kernel: _lambda_.1
$region0: #{_lambda_.1}
  #allocation0 [shape = 'u32[]', space=smem, size = 0x4, offset = 0x4, fixed_abs, tag = 'smem constant byte address 0x4 - core index']
  #allocation1 [shape = 'u32[72,128]{1,0:T(1,128)}', space=vmem, size = 0x9000, scoped, tag = 'internal scratch']
  %s0 = inlined_call_operand.vmem [shape: f32[2,16,256], index: 0, kind: input, shape index: {}]
  %s1 = inlined_call_operand.vmem [shape: f32[2,16,256], index: 1, kind: input, shape index: {}]
  %s2 = inlined_call_operand.vmem [shape: bf16[48,16], index: 2, kind: input, shape index: {}]
  %s3 = inlined_call_operand.vmem [shape: bf16[48,16], index: 3, kind: input, shape index: {}]
  %s4 = inlined_call_operand.vmem [shape: bf16[16,48], index: 4, kind: input, shape index: {}]
  %s5 = inlined_call_operand.vmem [shape: f32[48,9], index: 5, kind: input, shape index: {}]
  %s6 = inlined_call_operand.vmem [shape: f32[9,256], index: 6, kind: input, shape index: {}]
  %s7 = inlined_call_operand.vmem [shape: f32[2,16,256], index: 7, kind: output, shape index: {}]
  %s8 = sld [smem:[#allocation0]]
  $region61: #{_lambda_.1} parent=0
    _
  %s10 = ssub.s32 1, %s8
  %s11 = scalar_select 0, %s10, %s8
  loop: start=0, step=1, limit=4
  $region2: #{_lambda_.1} parent=0 // loop_pre_header
    _
  $region3: #{_lambda_.1} parent=0 // loop_header
    %s13 = sphi 0, %s17
    %p14 = scmp.ge.s32.totalorder %s13, 4
    %s23 = sphi 0, %s25
    %s26 = sphi 0, %s23
    %s27 = sphi 0, %s26
    %s43 = sphi 0, %s27
    %s49 = sphi 0, %s51
    %s52 = sphi 0, %s49
    %s53 = sphi 0, %s52
    %s69 = sphi 0, %s53
    %s73 = sphi 0, %s73
    %s75 = sphi 0, %s73
    %s76 = sphi 0, %s75
    %s90 = sphi 0, %s76
    %s94 = sphi 0, %s94
    %s96 = sphi 0, %s94
    %s97 = sphi 0, %s96
    %s111 = sphi 0, %s97
    %s115 = sphi 0, %s115
    %s117 = sphi 0, %s115
    %s118 = sphi 0, %s117
    %s132 = sphi 0, %s118
    %s136 = sphi 0, %s136
    %s138 = sphi 0, %s136
    %s139 = sphi 0, %s138
    %s153 = sphi 0, %s139
    %s157 = sphi 0, %s157
    %s159 = sphi 0, %s157
    %s160 = sphi 0, %s159
    %s174 = sphi 0, %s160
    %s180 = sphi 0, %s182
    %s183 = sphi 0, %s180
    %s184 = sphi 0, %s183
    %s200 = sphi 0, %s184
  $region4: #{_lambda_.1} parent=0 // loop_header_branch
    %16 = sbr.rel (%p14) target = $region8
  $region5: #{_lambda_.1} parent=0 // loop_body
    %s18 = ssub.s32 %s13, 1
    %s19 = ssub.s32 %s13, 2
    %s20 = sadd.s32 %s13, 1
    %s21 = ssub.s32 %s13, %s20
    %p22 = scmp.eq.s32.totalorder %s21, 0
    %s24 = sadd.s32 %s23, 1
    %s25 = scalar_select %p22, %s23, %s24
    %p28 = pneg %p22
    %p29 = scmp.eq.s32.totalorder %s13, 1
    %p30 = por %p28, %p29
    %p31 = scmp.ne.s32.totalorder %s23, %s26
    %p32 = scmp.eq.s32.totalorder %s13, 0
    %p33 = por %p31, %p32
    %p34 = scmp.ne.s32.totalorder %s23, %s26
    %p35 = scmp.eq.s32.totalorder %s18, 1
    %p36 = por %p34, %p35
    %p37 = scmp.ne.s32.totalorder %s26, %s27
    %p38 = scmp.eq.s32.totalorder %s18, 0
    %p39 = por %p37, %p38
    %p40 = scmp.ne.s32.totalorder %s26, %s27
    %p41 = scmp.eq.s32.totalorder %s19, 1
    %p42 = por %p40, %p41
    %p44 = scmp.ne.s32.totalorder %s27, %s43
    %p45 = scmp.eq.s32.totalorder %s19, 0
    %p46 = por %p44, %p45
    %s47 = ssub.s32 %s13, %s20
    %p48 = scmp.eq.s32.totalorder %s47, 0
    %s50 = sadd.s32 %s49, 1
    %s51 = scalar_select %p48, %s49, %s50
    %p54 = pneg %p48
    %p55 = scmp.eq.s32.totalorder %s13, 1
    %p56 = por %p54, %p55
    %p57 = scmp.ne.s32.totalorder %s49, %s52
    %p58 = scmp.eq.s32.totalorder %s13, 0
    %p59 = por %p57, %p58
    %p60 = scmp.ne.s32.totalorder %s49, %s52
    %p61 = scmp.eq.s32.totalorder %s18, 1
    %p62 = por %p60, %p61
    %p63 = scmp.ne.s32.totalorder %s52, %s53
    %p64 = scmp.eq.s32.totalorder %s18, 0
    %p65 = por %p63, %p64
    %p66 = scmp.ne.s32.totalorder %s52, %s53
    %p67 = scmp.eq.s32.totalorder %s19, 1
    %p68 = por %p66, %p67
    %p70 = scmp.ne.s32.totalorder %s53, %s69
    %p71 = scmp.eq.s32.totalorder %s19, 0
    %p72 = por %p70, %p71
    %s74 = sadd.s32 %s73, 1
    %p77 = scmp.eq.s32.totalorder %s13, 1
    %p78 = scmp.ne.s32.totalorder %s73, %s75
    %p79 = scmp.eq.s32.totalorder %s13, 0
    %p80 = por %p78, %p79
    %p81 = scmp.ne.s32.totalorder %s73, %s75
    %p82 = scmp.eq.s32.totalorder %s18, 1
    %p83 = por %p81, %p82
    %p84 = scmp.ne.s32.totalorder %s75, %s76
    %p85 = scmp.eq.s32.totalorder %s18, 0
    %p86 = por %p84, %p85
    %p87 = scmp.ne.s32.totalorder %s75, %s76
    %p88 = scmp.eq.s32.totalorder %s19, 1
    %p89 = por %p87, %p88
    %p91 = scmp.ne.s32.totalorder %s76, %s90
    %p92 = scmp.eq.s32.totalorder %s19, 0
    %p93 = por %p91, %p92
    %s95 = sadd.s32 %s94, 1
    %p98 = scmp.eq.s32.totalorder %s13, 1
    %p99 = scmp.ne.s32.totalorder %s94, %s96
    %p100 = scmp.eq.s32.totalorder %s13, 0
    %p101 = por %p99, %p100
    %p102 = scmp.ne.s32.totalorder %s94, %s96
    %p103 = scmp.eq.s32.totalorder %s18, 1
    %p104 = por %p102, %p103
    %p105 = scmp.ne.s32.totalorder %s96, %s97
    %p106 = scmp.eq.s32.totalorder %s18, 0
    %p107 = por %p105, %p106
    %p108 = scmp.ne.s32.totalorder %s96, %s97
    %p109 = scmp.eq.s32.totalorder %s19, 1
    %p110 = por %p108, %p109
    %p112 = scmp.ne.s32.totalorder %s97, %s111
    %p113 = scmp.eq.s32.totalorder %s19, 0
    %p114 = por %p112, %p113
    %s116 = sadd.s32 %s115, 1
    %p119 = scmp.eq.s32.totalorder %s13, 1
    %p120 = scmp.ne.s32.totalorder %s115, %s117
    %p121 = scmp.eq.s32.totalorder %s13, 0
    %p122 = por %p120, %p121
    %p123 = scmp.ne.s32.totalorder %s115, %s117
    %p124 = scmp.eq.s32.totalorder %s18, 1
    %p125 = por %p123, %p124
    %p126 = scmp.ne.s32.totalorder %s117, %s118
    %p127 = scmp.eq.s32.totalorder %s18, 0
    %p128 = por %p126, %p127
    %p129 = scmp.ne.s32.totalorder %s117, %s118
    %p130 = scmp.eq.s32.totalorder %s19, 1
    %p131 = por %p129, %p130
    %p133 = scmp.ne.s32.totalorder %s118, %s132
    %p134 = scmp.eq.s32.totalorder %s19, 0
    %p135 = por %p133, %p134
    %s137 = sadd.s32 %s136, 1
    %p140 = scmp.eq.s32.totalorder %s13, 1
    %p141 = scmp.ne.s32.totalorder %s136, %s138
    %p142 = scmp.eq.s32.totalorder %s13, 0
    %p143 = por %p141, %p142
    %p144 = scmp.ne.s32.totalorder %s136, %s138
    %p145 = scmp.eq.s32.totalorder %s18, 1
    %p146 = por %p144, %p145
    %p147 = scmp.ne.s32.totalorder %s138, %s139
    %p148 = scmp.eq.s32.totalorder %s18, 0
    %p149 = por %p147, %p148
    %p150 = scmp.ne.s32.totalorder %s138, %s139
    %p151 = scmp.eq.s32.totalorder %s19, 1
    %p152 = por %p150, %p151
    %p154 = scmp.ne.s32.totalorder %s139, %s153
    %p155 = scmp.eq.s32.totalorder %s19, 0
    %p156 = por %p154, %p155
    %s158 = sadd.s32 %s157, 1
    %p161 = scmp.eq.s32.totalorder %s13, 1
    %p162 = scmp.ne.s32.totalorder %s157, %s159
    %p163 = scmp.eq.s32.totalorder %s13, 0
    %p164 = por %p162, %p163
    %p165 = scmp.ne.s32.totalorder %s157, %s159
    %p166 = scmp.eq.s32.totalorder %s18, 1
    %p167 = por %p165, %p166
    %p168 = scmp.ne.s32.totalorder %s159, %s160
    %p169 = scmp.eq.s32.totalorder %s18, 0
    %p170 = por %p168, %p169
    %p171 = scmp.ne.s32.totalorder %s159, %s160
    %p172 = scmp.eq.s32.totalorder %s19, 1
    %p173 = por %p171, %p172
    %p175 = scmp.ne.s32.totalorder %s160, %s174
    %p176 = scmp.eq.s32.totalorder %s19, 0
    %p177 = por %p175, %p176
    %s178 = ssub.s32 %s13, %s20
    %p179 = scmp.eq.s32.totalorder %s178, 0
    %s181 = sadd.s32 %s180, 1
    %s182 = scalar_select %p179, %s180, %s181
    %p185 = pneg %p179
    %p186 = scmp.eq.s32.totalorder %s13, 1
    %p187 = por %p185, %p186
    %p188 = scmp.ne.s32.totalorder %s180, %s183
    %p189 = scmp.eq.s32.totalorder %s13, 0
    %p190 = por %p188, %p189
    %p191 = scmp.ne.s32.totalorder %s180, %s183
    %p192 = scmp.eq.s32.totalorder %s18, 1
    %p193 = por %p191, %p192
    %p194 = scmp.ne.s32.totalorder %s183, %s184
    %p195 = scmp.eq.s32.totalorder %s18, 0
    %p196 = por %p194, %p195
    %p197 = scmp.ne.s32.totalorder %s183, %s184
    %p198 = scmp.eq.s32.totalorder %s19, 1
    %p199 = por %p197, %p198
    %p201 = scmp.ne.s32.totalorder %s184, %s200
    %p202 = scmp.eq.s32.totalorder %s19, 0
    %p203 = por %p201, %p202
    %p204 = scmp.le.s32.totalorder 1, %s13
    %p205 = scmp.lt.s32.totalorder %s13, 3
    %p206 = pnand %p204, %p205
    %p207 = pneg %p206
    // Predicated region
    $region9: #{_lambda_.1} parent=5 // pred_check
      _
    $region10: #{_lambda_.1} parent=5 // pred_check_branch
      %209 = sbr.rel (%p206) target = $region12
    $region11: #{_lambda_.1} parent=5 // pred_region
      %s210 = ssub.s32 %s13, 1
      // Predicated region
      $region13: #{_lambda_.1} parent=11 // pred_check
        %p211 = pneg %p86
      $region14: #{_lambda_.1} parent=11 // pred_check_branch
        %213 = sbr.rel (%p211) target = $region16
      $region15: #{_lambda_.1} parent=11 // pred_region
        _
      $region16: #{_lambda_.1} parent=11 // pred_fallthru
        _
      // Predicated region
      $region17: #{_lambda_.1} parent=11 // pred_check
        %p214 = pneg %p107
      $region18: #{_lambda_.1} parent=11 // pred_check_branch
        %216 = sbr.rel (%p214) target = $region20
      $region19: #{_lambda_.1} parent=11 // pred_region
        _
      $region20: #{_lambda_.1} parent=11 // pred_fallthru
        _
      // Predicated region
      $region21: #{_lambda_.1} parent=11 // pred_check
        %p217 = pneg %p128
      $region22: #{_lambda_.1} parent=11 // pred_check_branch
        %219 = sbr.rel (%p217) target = $region24
      $region23: #{_lambda_.1} parent=11 // pred_region
        _
      $region24: #{_lambda_.1} parent=11 // pred_fallthru
        _
      // Predicated region
      $region25: #{_lambda_.1} parent=11 // pred_check
        %p220 = pneg %p149
      $region26: #{_lambda_.1} parent=11 // pred_check_branch
        %222 = sbr.rel (%p220) target = $region28
      $region27: #{_lambda_.1} parent=11 // pred_region
        _
      $region28: #{_lambda_.1} parent=11 // pred_fallthru
        _
      // Predicated region
      $region29: #{_lambda_.1} parent=11 // pred_check
        %p223 = pneg %p170
      $region30: #{_lambda_.1} parent=11 // pred_check_branch
        %225 = sbr.rel (%p223) target = $region32
      $region31: #{_lambda_.1} parent=11 // pred_region
        _
      $region32: #{_lambda_.1} parent=11 // pred_fallthru
        _
    $region12: #{_lambda_.1} parent=5 // pred_fallthru
      _
    %p226 = scmp.lt.s32.totalorder %s13, 2
    // Predicated region
    $region33: #{_lambda_.1} parent=5 // pred_check
      %p227 = pneg %p226
    $region34: #{_lambda_.1} parent=5 // pred_check_branch
      %229 = sbr.rel (%p227) target = $region36
    $region35: #{_lambda_.1} parent=5 // pred_region
      // Predicated region
      $region37: #{_lambda_.1} parent=35 // pred_check
        %p230 = pneg %p33
      $region38: #{_lambda_.1} parent=35 // pred_check_branch
        %232 = sbr.rel (%p230) target = $region40
      $region39: #{_lambda_.1} parent=35 // pred_region
        %p233 = scmp.lt.s32.totalorder %s13, 1
        %s234 = scalar_select %p233, %s13, 1
        %s235 = smul.addr %s234, 4
        %s236 = smul.addr %s235, 8
        %s237 = scalar_lea.vmem %s0, %s236
      $region40: #{_lambda_.1} parent=35 // pred_fallthru
        _
      // Predicated region
      $region41: #{_lambda_.1} parent=35 // pred_check
        %p238 = pneg %p59
      $region42: #{_lambda_.1} parent=35 // pred_check_branch
        %240 = sbr.rel (%p238) target = $region44
      $region43: #{_lambda_.1} parent=35 // pred_region
        %p241 = scmp.lt.s32.totalorder %s13, 1
        %s242 = scalar_select %p241, %s13, 1
        %s243 = smul.addr %s242, 4
        %s244 = smul.addr %s243, 8
        %s245 = scalar_lea.vmem %s1, %s244
      $region44: #{_lambda_.1} parent=35 // pred_fallthru
        _
    $region36: #{_lambda_.1} parent=5 // pred_fallthru
      _
    %p246 = scmp.le.s32.totalorder 1, %s13
    %p247 = scmp.lt.s32.totalorder %s13, 3
    %p248 = pnand %p246, %p247
    %p249 = pneg %p248
    // Predicated region
    $region45: #{_lambda_.1} parent=5 // pred_check
      _
    $region46: #{_lambda_.1} parent=5 // pred_check_branch
      %251 = sbr.rel (%p248) target = $region48
    $region47: #{_lambda_.1} parent=5 // pred_region
      %s252 = ssub.s32 %s13, 1
      %p253 = scmp.lt.s32.totalorder %s18, 1
      %s254 = scalar_select %p253, %s18, 1
      %s255 = smul.addr %s254, 4
      %s256 = smul.addr %s255, 8
      %s257 = scalar_lea.vmem %s0, %s256
      %p258 = pneg %p39
      %p259 = pneg %p36
      %p260 = scmp.lt.s32.totalorder %s18, 1
      %s261 = scalar_select %p260, %s18, 1
      %s262 = smul.addr %s261, 4
      %s263 = smul.addr %s262, 8
      %s264 = scalar_lea.vmem %s1, %s263
      %p265 = pneg %p65
      %p266 = pneg %p62
      %p267 = pneg %p86
      %p268 = pneg %p83
      %p269 = pneg %p107
      %p270 = pneg %p104
      %p271 = pneg %p128
      %p272 = pneg %p125
      %p273 = pneg %p149
      %p274 = pneg %p146
      %p275 = pneg %p170
      %p276 = pneg %p167
      %p277 = pneg %p196
      %p278 = pneg %p193
      %p279 = scmp.lt.s32.totalorder %s18, 1
      %s280 = scalar_select %p279, %s18, 1
      %s281 = smul.addr %s280, 4
      %s282 = smul.addr %s281, 8
      %s283 = scalar_lea.vmem %s7, %s282
      %p284 = scmp.lt.s32.totalorder %s18, 1
      %s285 = scalar_select %p284, %s18, 1
      %s286 = smul.addr %s285, 4
      %s287 = smul.addr %s286, 8
      %s288 = scalar_lea.vmem %s0, %s287
      %p289 = scmp.lt.s32.totalorder %s18, 1
      %s290 = scalar_select %p289, %s18, 1
      %s291 = smul.addr %s290, 4
      %s292 = smul.addr %s291, 8
      %s293 = scalar_lea.vmem %s1, %s292
      %p294 = scmp.lt.s32.totalorder %s18, 1
      %s295 = scalar_select %p294, %s18, 1
      %s296 = smul.addr %s295, 4
      %s297 = smul.addr %s296, 8
      %s298 = scalar_lea.vmem %s7, %s297
      %v300 = vld [vmem:[%s288] sm:$0xff]
      %v301 = vld [vmem:[%s288 + $0x8] sm:$0xff]
      %v302 = vld [vmem:[%s288 + $0x10] sm:$0xff]
      %v303 = vld [vmem:[%s288 + $0x18] sm:$0xff]
      %v304 = vpack.c.bf16 %v302, %v300
      %v305 = vpack.c.bf16 %v303, %v301
      %v306 = vld [vmem:[%s293] sm:$0xff]
      %v307 = vld [vmem:[%s293 + $0x8] sm:$0xff]
      %v308 = vld [vmem:[%s293 + $0x10] sm:$0xff]
      %v309 = vld [vmem:[%s293 + $0x18] sm:$0xff]
      %v310 = vpack.c.bf16 %v308, %v306
      %v311 = vpack.c.bf16 %v309, %v307
      %v312 = vld [vmem:[%s2] sm:$0xf]
      %v313 = vld [vmem:[%s2 + $0x4] sm:$0xf]
      %v314 = vld [vmem:[%s2 + $0x8] sm:$0xf]
      %v315 = vld [vmem:[%s2 + $0xc] sm:$0xf]
      %v316 = vld [vmem:[%s2 + $0x10] sm:$0xf]
      %v317 = vld [vmem:[%s2 + $0x14] sm:$0xf]
      %v324 = vunpack.c.l.b16 %v312
      %v325 = vunpack.c.l.b16 %v313
      %v326 = vunpack.c.l.b16 %v314
      %v327 = vunpack.c.l.b16 %v315
      %v328 = vunpack.c.l.b16 %v316
      %v329 = vunpack.c.l.b16 %v317
      %v330 = vpack.c.b16 %v325, %v324
      %v331 = vpack.c.b16 %v327, %v326
      %v332 = vpack.c.b16 %v329, %v328
      %vm333 = vcmask 130048
      %v335 = vsel %vm333, %v330, 0
      %v338 = vsel %vm333, %v331, 0
      %v341 = vsel %vm333, %v332, 0
      %343 = vmatpush.bf16.msra.mxu0 0
      %344 = vmatpush.bf16.msra.mxu0 0
      %345 = vmatpush.bf16.msra.mxu0 0
      %346 = vmatpush.bf16.msra.mxu0 0
      %347 = vmatpush.bf16.msra.mxu0 0
      %348 = vmatpush.bf16.msra.mxu0 0
      %349 = vmatpush.bf16.msra.mxu0 0
      %350 = vmatpush.bf16.msra.mxu0 %v304
      %351 = vmatmul.bf16.gmra.mxu0 %v335
      %v352 = vpop.f32.mrf.mxu0
      %v353 = vadd.f32 0.0, %v352
      %v354 = vpop.f32.mrf.mxu0
      %v355 = vadd.f32 0.0, %v354
      %356 = vmatmul.bf16.gmra.mxu0 %v338
      %v357 = vpop.f32.mrf.mxu0
      %v358 = vadd.f32 0.0, %v357
      %v359 = vpop.f32.mrf.mxu0
      %v360 = vadd.f32 0.0, %v359
      %361 = vmatmul.bf16.gmra.mxu0 %v341
      %v362 = vpop.f32.mrf.mxu0
      %v363 = vadd.f32 0.0, %v362
      %v364 = vpop.f32.mrf.mxu0
      %v365 = vadd.f32 0.0, %v364
      %366 = vdwg.mxu0
      %367 = vmatpush.bf16.msra.mxu0 0
      %368 = vmatpush.bf16.msra.mxu0 0
      %369 = vmatpush.bf16.msra.mxu0 0
      %370 = vmatpush.bf16.msra.mxu0 0
      %371 = vmatpush.bf16.msra.mxu0 0
      %372 = vmatpush.bf16.msra.mxu0 0
      %373 = vmatpush.bf16.msra.mxu0 0
      %374 = vmatpush.bf16.msra.mxu0 %v305
      %375 = vmatmul.bf16.gmra.mxu0 %v335
      %v376 = vpop.f32.mrf.mxu0
      %v377 = vadd.f32 0.0, %v376
      %v378 = vpop.f32.mrf.mxu0
      %v379 = vadd.f32 0.0, %v378
      %380 = vmatmul.bf16.gmra.mxu0 %v338
      %v381 = vpop.f32.mrf.mxu0
      %v382 = vadd.f32 0.0, %v381
      %v383 = vpop.f32.mrf.mxu0
      %v384 = vadd.f32 0.0, %v383
      %385 = vmatmul.bf16.gmra.mxu0 %v341
      %v386 = vpop.f32.mrf.mxu0
      %v387 = vadd.f32 0.0, %v386
      %v388 = vpop.f32.mrf.mxu0
      %v389 = vadd.f32 0.0, %v388
      %390 = vdwg.mxu0
      %391 = vrot.lane.b32.xlu0 %v353, 17
      %v392 = vpop.permute.xlu0 %391
      %393 = vrot.lane.b32.xlu0 %v355, 17
      %v394 = vpop.permute.xlu0 %393
      %395 = vrot.lane.b32.xlu0 %v358, 17
      %v396 = vpop.permute.xlu0 %395
      %397 = vrot.lane.b32.xlu0 %v360, 17
      %v398 = vpop.permute.xlu0 %397
      %399 = vrot.lane.b32.xlu0 %v363, 17
      %v400 = vpop.permute.xlu0 %399
      %401 = vrot.lane.b32.xlu0 %v365, 17
      %v402 = vpop.permute.xlu0 %401
      %403 = vrot.lane.b32.xlu0 %v377, 17
      %v404 = vpop.permute.xlu0 %403
      %405 = vrot.lane.b32.xlu0 %v379, 17
      %v406 = vpop.permute.xlu0 %405
      %407 = vrot.lane.b32.xlu0 %v382, 17
      %v408 = vpop.permute.xlu0 %407
      %409 = vrot.lane.b32.xlu0 %v384, 17
      %v410 = vpop.permute.xlu0 %409
      %411 = vrot.lane.b32.xlu0 %v387, 17
      %v412 = vpop.permute.xlu0 %411
      %413 = vrot.lane.b32.xlu0 %v389, 17
      %v414 = vpop.permute.xlu0 %413
      %v415 = vlaneseq
      %v416 = vand.u32 %v415, 127
      %vm417 = vcmp.lt.s32.totalorder %v416, 17
      %v418 = vsel %vm417, %v392, %v404
      %v419 = vsel %vm417, %v394, %v406
      %v420 = vsel %vm417, %v396, %v408
      %v421 = vsel %vm417, %v398, %v410
      %v422 = vsel %vm417, %v400, %v412
      %v423 = vsel %vm417, %v402, %v414
      %v424 = vsel %vm417, %v404, %v392
      %v425 = vsel %vm417, %v406, %v394
      %v426 = vsel %vm417, %v408, %v396
      %v427 = vsel %vm417, %v410, %v398
      %v428 = vsel %vm417, %v412, %v400
      %v429 = vsel %vm417, %v414, %v402
      %v430 = vld [vmem:[%s5] sm:$0xff]
      %v431 = vld [vmem:[%s5 + $0x8] sm:$0xff]
      %v432 = vld [vmem:[%s5 + $0x10] sm:$0xff]
      %v433 = vld [vmem:[%s5 + $0x18] sm:$0xff]
      %v434 = vld [vmem:[%s5 + $0x20] sm:$0xff]
      %v435 = vld [vmem:[%s5 + $0x28] sm:$0xff]
      %v436 = vld [vmem:[%s6] ss:$8 sm:$0x3]
      %438 = vset.pattern.permute.xlu0 0
      %439 = vperm.xlu0 %438, %v430
      %v440 = vpop.permute.xlu0 %439
      %443 = vset.pattern.permute.xlu0 0
      %444 = vperm.xlu0 %443, %v431
      %v445 = vpop.permute.xlu0 %444
      %448 = vset.pattern.permute.xlu0 0
      %449 = vperm.xlu0 %448, %v432
      %v450 = vpop.permute.xlu0 %449
      %453 = vset.pattern.permute.xlu0 0
      %454 = vperm.xlu0 %453, %v433
      %v455 = vpop.permute.xlu0 %454
      %458 = vset.pattern.permute.xlu0 0
      %459 = vperm.xlu0 %458, %v434
      %v460 = vpop.permute.xlu0 %459
      %463 = vset.pattern.permute.xlu0 0
      %464 = vperm.xlu0 %463, %v435
      %v465 = vpop.permute.xlu0 %464
      %v468 = vperm.slane %v436, 0
      %v469 = vperm.slane %v436, 1
      %v472 = vmul.f32 %v440, %v468
      %v473 = vmul.f32 %v440, %v469
      %v474 = vmul.f32 %v445, %v468
      %v475 = vmul.f32 %v445, %v469
      %v476 = vmul.f32 %v450, %v468
      %v477 = vmul.f32 %v450, %v469
      %v478 = vmul.f32 %v455, %v468
      %v479 = vmul.f32 %v455, %v469
      %v480 = vmul.f32 %v460, %v468
      %v481 = vmul.f32 %v460, %v469
      %v482 = vmul.f32 %v465, %v468
      %v483 = vmul.f32 %v465, %v469
      %v484 = vmul.f32 %v424, %v472
      %v485 = vmul.f32 %v418, %v473
      %v486 = vmul.f32 %v425, %v474
      %v487 = vmul.f32 %v419, %v475
      %v488 = vmul.f32 %v426, %v476
      %v489 = vmul.f32 %v420, %v477
      %v490 = vmul.f32 %v427, %v478
      %v491 = vmul.f32 %v421, %v479
      %v492 = vmul.f32 %v428, %v480
      %v493 = vmul.f32 %v422, %v481
      %v494 = vmul.f32 %v429, %v482
      %v495 = vmul.f32 %v423, %v483
      %496 = vrot.lane.b32.xlu0 %v353, 16
      %v497 = vpop.permute.xlu0 %496
      %498 = vrot.lane.b32.xlu0 %v355, 16
      %v499 = vpop.permute.xlu0 %498
      %500 = vrot.lane.b32.xlu0 %v358, 16
      %v501 = vpop.permute.xlu0 %500
      %502 = vrot.lane.b32.xlu0 %v360, 16
      %v503 = vpop.permute.xlu0 %502
      %504 = vrot.lane.b32.xlu0 %v363, 16
      %v505 = vpop.permute.xlu0 %504
      %506 = vrot.lane.b32.xlu0 %v365, 16
      %v507 = vpop.permute.xlu0 %506
      %508 = vrot.lane.b32.xlu0 %v377, 16
      %v509 = vpop.permute.xlu0 %508
      %510 = vrot.lane.b32.xlu0 %v379, 16
      %v511 = vpop.permute.xlu0 %510
      %512 = vrot.lane.b32.xlu0 %v382, 16
      %v513 = vpop.permute.xlu0 %512
      %514 = vrot.lane.b32.xlu0 %v384, 16
      %v515 = vpop.permute.xlu0 %514
      %516 = vrot.lane.b32.xlu0 %v387, 16
      %v517 = vpop.permute.xlu0 %516
      %518 = vrot.lane.b32.xlu0 %v389, 16
      %v519 = vpop.permute.xlu0 %518
      %vm520 = vcmp.lt.s32.totalorder %v416, 16
      %v521 = vsel %vm520, %v497, %v509
      %v522 = vsel %vm520, %v499, %v511
      %v523 = vsel %vm520, %v501, %v513
      %v524 = vsel %vm520, %v503, %v515
      %v525 = vsel %vm520, %v505, %v517
      %v526 = vsel %vm520, %v507, %v519
      %v527 = vsel %vm520, %v509, %v497
      %v528 = vsel %vm520, %v511, %v499
      %v529 = vsel %vm520, %v513, %v501
      %v530 = vsel %vm520, %v515, %v503
      %v531 = vsel %vm520, %v517, %v505
      %v532 = vsel %vm520, %v519, %v507
      %s533 = scalar_lea.vmem %s6, 1
      %v534 = vld [vmem:[%s533] ss:$8 sm:$0x3]
      %535 = vset.pattern.permute.xlu0 1
      %536 = vperm.xlu0 %535, %v430
      %v537 = vpop.permute.xlu0 %536
      %539 = vset.pattern.permute.xlu0 1
      %540 = vperm.xlu0 %539, %v431
      %v541 = vpop.permute.xlu0 %540
      %543 = vset.pattern.permute.xlu0 1
      %544 = vperm.xlu0 %543, %v432
      %v545 = vpop.permute.xlu0 %544
      %547 = vset.pattern.permute.xlu0 1
      %548 = vperm.xlu0 %547, %v433
      %v549 = vpop.permute.xlu0 %548
      %551 = vset.pattern.permute.xlu0 1
      %552 = vperm.xlu0 %551, %v434
      %v553 = vpop.permute.xlu0 %552
      %555 = vset.pattern.permute.xlu0 1
      %556 = vperm.xlu0 %555, %v435
      %v557 = vpop.permute.xlu0 %556
      %v560 = vperm.slane %v534, 0
      %v561 = vperm.slane %v534, 1
      %v564 = vmul.f32 %v537, %v560
      %v565 = vmul.f32 %v537, %v561
      %v566 = vmul.f32 %v541, %v560
      %v567 = vmul.f32 %v541, %v561
      %v568 = vmul.f32 %v545, %v560
      %v569 = vmul.f32 %v545, %v561
      %v570 = vmul.f32 %v549, %v560
      %v571 = vmul.f32 %v549, %v561
      %v572 = vmul.f32 %v553, %v560
      %v573 = vmul.f32 %v553, %v561
      %v574 = vmul.f32 %v557, %v560
      %v575 = vmul.f32 %v557, %v561
      %v576 = vmul.f32 %v527, %v564
      %v577 = vmul.f32 %v521, %v565
      %v578 = vmul.f32 %v528, %v566
      %v579 = vmul.f32 %v522, %v567
      %v580 = vmul.f32 %v529, %v568
      %v581 = vmul.f32 %v523, %v569
      %v582 = vmul.f32 %v530, %v570
      %v583 = vmul.f32 %v524, %v571
      %v584 = vmul.f32 %v531, %v572
      %v585 = vmul.f32 %v525, %v573
      %v586 = vmul.f32 %v532, %v574
      %v587 = vmul.f32 %v526, %v575
      %v588 = vadd.f32 %v484, %v576
      %v589 = vadd.f32 %v485, %v577
      %v590 = vadd.f32 %v486, %v578
      %v591 = vadd.f32 %v487, %v579
      %v592 = vadd.f32 %v488, %v580
      %v593 = vadd.f32 %v489, %v581
      %v594 = vadd.f32 %v490, %v582
      %v595 = vadd.f32 %v491, %v583
      %v596 = vadd.f32 %v492, %v584
      %v597 = vadd.f32 %v493, %v585
      %v598 = vadd.f32 %v494, %v586
      %v599 = vadd.f32 %v495, %v587
      %600 = vrot.lane.b32.xlu0 %v353, 15
      %v601 = vpop.permute.xlu0 %600
      %602 = vrot.lane.b32.xlu0 %v355, 15
      %v603 = vpop.permute.xlu0 %602
      %604 = vrot.lane.b32.xlu0 %v358, 15
      %v605 = vpop.permute.xlu0 %604
      %606 = vrot.lane.b32.xlu0 %v360, 15
      %v607 = vpop.permute.xlu0 %606
      %608 = vrot.lane.b32.xlu0 %v363, 15
      %v609 = vpop.permute.xlu0 %608
      %610 = vrot.lane.b32.xlu0 %v365, 15
      %v611 = vpop.permute.xlu0 %610
      %612 = vrot.lane.b32.xlu0 %v377, 15
      %v613 = vpop.permute.xlu0 %612
      %614 = vrot.lane.b32.xlu0 %v379, 15
      %v615 = vpop.permute.xlu0 %614
      %616 = vrot.lane.b32.xlu0 %v382, 15
      %v617 = vpop.permute.xlu0 %616
      %618 = vrot.lane.b32.xlu0 %v384, 15
      %v619 = vpop.permute.xlu0 %618
      %620 = vrot.lane.b32.xlu0 %v387, 15
      %v621 = vpop.permute.xlu0 %620
      %622 = vrot.lane.b32.xlu0 %v389, 15
      %v623 = vpop.permute.xlu0 %622
      %vm624 = vcmp.lt.s32.totalorder %v416, 15
      %v625 = vsel %vm624, %v601, %v613
      %v626 = vsel %vm624, %v603, %v615
      %v627 = vsel %vm624, %v605, %v617
      %v628 = vsel %vm624, %v607, %v619
      %v629 = vsel %vm624, %v609, %v621
      %v630 = vsel %vm624, %v611, %v623
      %v631 = vsel %vm624, %v613, %v601
      %v632 = vsel %vm624, %v615, %v603
      %v633 = vsel %vm624, %v617, %v605
      %v634 = vsel %vm624, %v619, %v607
      %v635 = vsel %vm624, %v621, %v609
      %v636 = vsel %vm624, %v623, %v611
      %s637 = scalar_lea.vmem %s6, 2
      %v638 = vld [vmem:[%s637] ss:$8 sm:$0x3]
      %639 = vset.pattern.permute.xlu0 2
      %640 = vperm.xlu0 %639, %v430
      %v641 = vpop.permute.xlu0 %640
      %643 = vset.pattern.permute.xlu0 2
      %644 = vperm.xlu0 %643, %v431
      %v645 = vpop.permute.xlu0 %644
      %647 = vset.pattern.permute.xlu0 2
      %648 = vperm.xlu0 %647, %v432
      %v649 = vpop.permute.xlu0 %648
      %651 = vset.pattern.permute.xlu0 2
      %652 = vperm.xlu0 %651, %v433
      %v653 = vpop.permute.xlu0 %652
      %655 = vset.pattern.permute.xlu0 2
      %656 = vperm.xlu0 %655, %v434
      %v657 = vpop.permute.xlu0 %656
      %659 = vset.pattern.permute.xlu0 2
      %660 = vperm.xlu0 %659, %v435
      %v661 = vpop.permute.xlu0 %660
      %v664 = vperm.slane %v638, 0
      %v665 = vperm.slane %v638, 1
      %v668 = vmul.f32 %v641, %v664
      %v669 = vmul.f32 %v641, %v665
      %v670 = vmul.f32 %v645, %v664
      %v671 = vmul.f32 %v645, %v665
      %v672 = vmul.f32 %v649, %v664
      %v673 = vmul.f32 %v649, %v665
      %v674 = vmul.f32 %v653, %v664
      %v675 = vmul.f32 %v653, %v665
      %v676 = vmul.f32 %v657, %v664
      %v677 = vmul.f32 %v657, %v665
      %v678 = vmul.f32 %v661, %v664
      %v679 = vmul.f32 %v661, %v665
      %v680 = vmul.f32 %v631, %v668
      %v681 = vmul.f32 %v625, %v669
      %v682 = vmul.f32 %v632, %v670
      %v683 = vmul.f32 %v626, %v671
      %v684 = vmul.f32 %v633, %v672
      %v685 = vmul.f32 %v627, %v673
      %v686 = vmul.f32 %v634, %v674
      %v687 = vmul.f32 %v628, %v675
      %v688 = vmul.f32 %v635, %v676
      %v689 = vmul.f32 %v629, %v677
      %v690 = vmul.f32 %v636, %v678
      %v691 = vmul.f32 %v630, %v679
      %v692 = vadd.f32 %v588, %v680
      %v693 = vadd.f32 %v589, %v681
      %v694 = vadd.f32 %v590, %v682
      %v695 = vadd.f32 %v591, %v683
      %v696 = vadd.f32 %v592, %v684
      %v697 = vadd.f32 %v593, %v685
      %v698 = vadd.f32 %v594, %v686
      %v699 = vadd.f32 %v595, %v687
      %v700 = vadd.f32 %v596, %v688
      %v701 = vadd.f32 %v597, %v689
      %v702 = vadd.f32 %v598, %v690
      %v703 = vadd.f32 %v599, %v691
      %704 = vrot.lane.b32.xlu0 %v353, 1
      %v705 = vpop.permute.xlu0 %704
      %706 = vrot.lane.b32.xlu0 %v355, 1
      %v707 = vpop.permute.xlu0 %706
      %708 = vrot.lane.b32.xlu0 %v358, 1
      %v709 = vpop.permute.xlu0 %708
      %710 = vrot.lane.b32.xlu0 %v360, 1
      %v711 = vpop.permute.xlu0 %710
      %712 = vrot.lane.b32.xlu0 %v363, 1
      %v713 = vpop.permute.xlu0 %712
      %714 = vrot.lane.b32.xlu0 %v365, 1
      %v715 = vpop.permute.xlu0 %714
      %716 = vrot.lane.b32.xlu0 %v377, 1
      %v717 = vpop.permute.xlu0 %716
      %718 = vrot.lane.b32.xlu0 %v379, 1
      %v719 = vpop.permute.xlu0 %718
      %720 = vrot.lane.b32.xlu0 %v382, 1
      %v721 = vpop.permute.xlu0 %720
      %722 = vrot.lane.b32.xlu0 %v384, 1
      %v723 = vpop.permute.xlu0 %722
      %724 = vrot.lane.b32.xlu0 %v387, 1
      %v725 = vpop.permute.xlu0 %724
      %726 = vrot.lane.b32.xlu0 %v389, 1
      %v727 = vpop.permute.xlu0 %726
      %vm728 = vcmp.lt.s32.totalorder %v416, 1
      %v729 = vsel %vm728, %v705, %v717
      %v730 = vsel %vm728, %v707, %v719
      %v731 = vsel %vm728, %v709, %v721
      %v732 = vsel %vm728, %v711, %v723
      %v733 = vsel %vm728, %v713, %v725
      %v734 = vsel %vm728, %v715, %v727
      %v735 = vsel %vm728, %v717, %v705
      %v736 = vsel %vm728, %v719, %v707
      %v737 = vsel %vm728, %v721, %v709
      %v738 = vsel %vm728, %v723, %v711
      %v739 = vsel %vm728, %v725, %v713
      %v740 = vsel %vm728, %v727, %v715
      %s741 = scalar_lea.vmem %s6, 3
      %v742 = vld [vmem:[%s741] ss:$8 sm:$0x3]
      %743 = vset.pattern.permute.xlu0 3
      %744 = vperm.xlu0 %743, %v430
      %v745 = vpop.permute.xlu0 %744
      %747 = vset.pattern.permute.xlu0 3
      %748 = vperm.xlu0 %747, %v431
      %v749 = vpop.permute.xlu0 %748
      %751 = vset.pattern.permute.xlu0 3
      %752 = vperm.xlu0 %751, %v432
      %v753 = vpop.permute.xlu0 %752
      %755 = vset.pattern.permute.xlu0 3
      %756 = vperm.xlu0 %755, %v433
      %v757 = vpop.permute.xlu0 %756
      %759 = vset.pattern.permute.xlu0 3
      %760 = vperm.xlu0 %759, %v434
      %v761 = vpop.permute.xlu0 %760
      %763 = vset.pattern.permute.xlu0 3
      %764 = vperm.xlu0 %763, %v435
      %v765 = vpop.permute.xlu0 %764
      %v768 = vperm.slane %v742, 0
      %v769 = vperm.slane %v742, 1
      %v772 = vmul.f32 %v745, %v768
      %v773 = vmul.f32 %v745, %v769
      %v774 = vmul.f32 %v749, %v768
      %v775 = vmul.f32 %v749, %v769
      %v776 = vmul.f32 %v753, %v768
      %v777 = vmul.f32 %v753, %v769
      %v778 = vmul.f32 %v757, %v768
      %v779 = vmul.f32 %v757, %v769
      %v780 = vmul.f32 %v761, %v768
      %v781 = vmul.f32 %v761, %v769
      %v782 = vmul.f32 %v765, %v768
      %v783 = vmul.f32 %v765, %v769
      %v784 = vmul.f32 %v735, %v772
      %v785 = vmul.f32 %v729, %v773
      %v786 = vmul.f32 %v736, %v774
      %v787 = vmul.f32 %v730, %v775
      %v788 = vmul.f32 %v737, %v776
      %v789 = vmul.f32 %v731, %v777
      %v790 = vmul.f32 %v738, %v778
      %v791 = vmul.f32 %v732, %v779
      %v792 = vmul.f32 %v739, %v780
      %v793 = vmul.f32 %v733, %v781
      %v794 = vmul.f32 %v740, %v782
      %v795 = vmul.f32 %v734, %v783
      %v796 = vadd.f32 %v692, %v784
      %v797 = vadd.f32 %v693, %v785
      %v798 = vadd.f32 %v694, %v786
      %v799 = vadd.f32 %v695, %v787
      %v800 = vadd.f32 %v696, %v788
      %v801 = vadd.f32 %v697, %v789
      %v802 = vadd.f32 %v698, %v790
      %v803 = vadd.f32 %v699, %v791
      %v804 = vadd.f32 %v700, %v792
      %v805 = vadd.f32 %v701, %v793
      %v806 = vadd.f32 %v702, %v794
      %v807 = vadd.f32 %v703, %v795
      %s808 = scalar_lea.vmem %s6, 4
      %v809 = vld [vmem:[%s808] ss:$8 sm:$0x3]
      %810 = vset.pattern.permute.xlu0 4
      %811 = vperm.xlu0 %810, %v430
      %v812 = vpop.permute.xlu0 %811
      %814 = vset.pattern.permute.xlu0 4
      %815 = vperm.xlu0 %814, %v431
      %v816 = vpop.permute.xlu0 %815
      %818 = vset.pattern.permute.xlu0 4
      %819 = vperm.xlu0 %818, %v432
      %v820 = vpop.permute.xlu0 %819
      %822 = vset.pattern.permute.xlu0 4
      %823 = vperm.xlu0 %822, %v433
      %v824 = vpop.permute.xlu0 %823
      %826 = vset.pattern.permute.xlu0 4
      %827 = vperm.xlu0 %826, %v434
      %v828 = vpop.permute.xlu0 %827
      %830 = vset.pattern.permute.xlu0 4
      %831 = vperm.xlu0 %830, %v435
      %v832 = vpop.permute.xlu0 %831
      %v835 = vperm.slane %v809, 0
      %v836 = vperm.slane %v809, 1
      %v839 = vmul.f32 %v812, %v835
      %v840 = vmul.f32 %v812, %v836
      %v841 = vmul.f32 %v816, %v835
      %v842 = vmul.f32 %v816, %v836
      %v843 = vmul.f32 %v820, %v835
      %v844 = vmul.f32 %v820, %v836
      %v845 = vmul.f32 %v824, %v835
      %v846 = vmul.f32 %v824, %v836
      %v847 = vmul.f32 %v828, %v835
      %v848 = vmul.f32 %v828, %v836
      %v849 = vmul.f32 %v832, %v835
      %v850 = vmul.f32 %v832, %v836
      %v851 = vmul.f32 %v353, %v839
      %v852 = vmul.f32 %v377, %v840
      %v853 = vmul.f32 %v355, %v841
      %v854 = vmul.f32 %v379, %v842
      %v855 = vmul.f32 %v358, %v843
      %v856 = vmul.f32 %v382, %v844
      %v857 = vmul.f32 %v360, %v845
      %v858 = vmul.f32 %v384, %v846
      %v859 = vmul.f32 %v363, %v847
      %v860 = vmul.f32 %v387, %v848
      %v861 = vmul.f32 %v365, %v849
      %v862 = vmul.f32 %v389, %v850
      %v863 = vadd.f32 %v796, %v851
      %v864 = vadd.f32 %v797, %v852
      %v865 = vadd.f32 %v798, %v853
      %v866 = vadd.f32 %v799, %v854
      %v867 = vadd.f32 %v800, %v855
      %v868 = vadd.f32 %v801, %v856
      %v869 = vadd.f32 %v802, %v857
      %v870 = vadd.f32 %v803, %v858
      %v871 = vadd.f32 %v804, %v859
      %v872 = vadd.f32 %v805, %v860
      %v873 = vadd.f32 %v806, %v861
      %v874 = vadd.f32 %v807, %v862
      %875 = vrot.lane.b32.xlu0 %v353, 127
      %v876 = vpop.permute.xlu0 %875
      %877 = vrot.lane.b32.xlu0 %v355, 127
      %v878 = vpop.permute.xlu0 %877
      %879 = vrot.lane.b32.xlu0 %v358, 127
      %v880 = vpop.permute.xlu0 %879
      %881 = vrot.lane.b32.xlu0 %v360, 127
      %v882 = vpop.permute.xlu0 %881
      %883 = vrot.lane.b32.xlu0 %v363, 127
      %v884 = vpop.permute.xlu0 %883
      %885 = vrot.lane.b32.xlu0 %v365, 127
      %v886 = vpop.permute.xlu0 %885
      %887 = vrot.lane.b32.xlu0 %v377, 127
      %v888 = vpop.permute.xlu0 %887
      %889 = vrot.lane.b32.xlu0 %v379, 127
      %v890 = vpop.permute.xlu0 %889
      %891 = vrot.lane.b32.xlu0 %v382, 127
      %v892 = vpop.permute.xlu0 %891
      %893 = vrot.lane.b32.xlu0 %v384, 127
      %v894 = vpop.permute.xlu0 %893
      %895 = vrot.lane.b32.xlu0 %v387, 127
      %v896 = vpop.permute.xlu0 %895
      %897 = vrot.lane.b32.xlu0 %v389, 127
      %v898 = vpop.permute.xlu0 %897
      %vm899 = vcmp.lt.s32.totalorder %v416, 127
      %v900 = vsel %vm899, %v876, %v888
      %v901 = vsel %vm899, %v878, %v890
      %v902 = vsel %vm899, %v880, %v892
      %v903 = vsel %vm899, %v882, %v894
      %v904 = vsel %vm899, %v884, %v896
      %v905 = vsel %vm899, %v886, %v898
      %v906 = vsel %vm899, %v888, %v876
      %v907 = vsel %vm899, %v890, %v878
      %v908 = vsel %vm899, %v892, %v880
      %v909 = vsel %vm899, %v894, %v882
      %v910 = vsel %vm899, %v896, %v884
      %v911 = vsel %vm899, %v898, %v886
      %s912 = scalar_lea.vmem %s6, 5
      %v913 = vld [vmem:[%s912] ss:$8 sm:$0x3]
      %914 = vset.pattern.permute.xlu0 5
      %915 = vperm.xlu0 %914, %v430
      %v916 = vpop.permute.xlu0 %915
      %918 = vset.pattern.permute.xlu0 5
      %919 = vperm.xlu0 %918, %v431
      %v920 = vpop.permute.xlu0 %919
      %922 = vset.pattern.permute.xlu0 5
      %923 = vperm.xlu0 %922, %v432
      %v924 = vpop.permute.xlu0 %923
      %926 = vset.pattern.permute.xlu0 5
      %927 = vperm.xlu0 %926, %v433
      %v928 = vpop.permute.xlu0 %927
      %930 = vset.pattern.permute.xlu0 5
      %931 = vperm.xlu0 %930, %v434
      %v932 = vpop.permute.xlu0 %931
      %934 = vset.pattern.permute.xlu0 5
      %935 = vperm.xlu0 %934, %v435
      %v936 = vpop.permute.xlu0 %935
      %v939 = vperm.slane %v913, 0
      %v940 = vperm.slane %v913, 1
      %v943 = vmul.f32 %v916, %v939
      %v944 = vmul.f32 %v916, %v940
      %v945 = vmul.f32 %v920, %v939
      %v946 = vmul.f32 %v920, %v940
      %v947 = vmul.f32 %v924, %v939
      %v948 = vmul.f32 %v924, %v940
      %v949 = vmul.f32 %v928, %v939
      %v950 = vmul.f32 %v928, %v940
      %v951 = vmul.f32 %v932, %v939
      %v952 = vmul.f32 %v932, %v940
      %v953 = vmul.f32 %v936, %v939
      %v954 = vmul.f32 %v936, %v940
      %v955 = vmul.f32 %v900, %v943
      %v956 = vmul.f32 %v906, %v944
      %v957 = vmul.f32 %v901, %v945
      %v958 = vmul.f32 %v907, %v946
      %v959 = vmul.f32 %v902, %v947
      %v960 = vmul.f32 %v908, %v948
      %v961 = vmul.f32 %v903, %v949
      %v962 = vmul.f32 %v909, %v950
      %v963 = vmul.f32 %v904, %v951
      %v964 = vmul.f32 %v910, %v952
      %v965 = vmul.f32 %v905, %v953
      %v966 = vmul.f32 %v911, %v954
      %v967 = vadd.f32 %v863, %v955
      %v968 = vadd.f32 %v864, %v956
      %v969 = vadd.f32 %v865, %v957
      %v970 = vadd.f32 %v866, %v958
      %v971 = vadd.f32 %v867, %v959
      %v972 = vadd.f32 %v868, %v960
      %v973 = vadd.f32 %v869, %v961
      %v974 = vadd.f32 %v870, %v962
      %v975 = vadd.f32 %v871, %v963
      %v976 = vadd.f32 %v872, %v964
      %v977 = vadd.f32 %v873, %v965
      %v978 = vadd.f32 %v874, %v966
      %979 = vrot.lane.b32.xlu0 %v353, 113
      %v980 = vpop.permute.xlu0 %979
      %981 = vrot.lane.b32.xlu0 %v355, 113
      %v982 = vpop.permute.xlu0 %981
      %983 = vrot.lane.b32.xlu0 %v358, 113
      %v984 = vpop.permute.xlu0 %983
      %985 = vrot.lane.b32.xlu0 %v360, 113
      %v986 = vpop.permute.xlu0 %985
      %987 = vrot.lane.b32.xlu0 %v363, 113
      %v988 = vpop.permute.xlu0 %987
      %989 = vrot.lane.b32.xlu0 %v365, 113
      %v990 = vpop.permute.xlu0 %989
      %991 = vrot.lane.b32.xlu0 %v377, 113
      %v992 = vpop.permute.xlu0 %991
      %993 = vrot.lane.b32.xlu0 %v379, 113
      %v994 = vpop.permute.xlu0 %993
      %995 = vrot.lane.b32.xlu0 %v382, 113
      %v996 = vpop.permute.xlu0 %995
      %997 = vrot.lane.b32.xlu0 %v384, 113
      %v998 = vpop.permute.xlu0 %997
      %999 = vrot.lane.b32.xlu0 %v387, 113
      %v1000 = vpop.permute.xlu0 %999
      %1001 = vrot.lane.b32.xlu0 %v389, 113
      %v1002 = vpop.permute.xlu0 %1001
      %vm1003 = vcmp.lt.s32.totalorder %v416, 113
      %v1004 = vsel %vm1003, %v980, %v992
      %v1005 = vsel %vm1003, %v982, %v994
      %v1006 = vsel %vm1003, %v984, %v996
      %v1007 = vsel %vm1003, %v986, %v998
      %v1008 = vsel %vm1003, %v988, %v1000
      %v1009 = vsel %vm1003, %v990, %v1002
      %v1010 = vsel %vm1003, %v992, %v980
      %v1011 = vsel %vm1003, %v994, %v982
      %v1012 = vsel %vm1003, %v996, %v984
      %v1013 = vsel %vm1003, %v998, %v986
      %v1014 = vsel %vm1003, %v1000, %v988
      %v1015 = vsel %vm1003, %v1002, %v990
      %s1016 = scalar_lea.vmem %s6, 6
      %v1017 = vld [vmem:[%s1016] ss:$8 sm:$0x3]
      %1018 = vset.pattern.permute.xlu0 6
      %1019 = vperm.xlu0 %1018, %v430
      %v1020 = vpop.permute.xlu0 %1019
      %1022 = vset.pattern.permute.xlu0 6
      %1023 = vperm.xlu0 %1022, %v431
      %v1024 = vpop.permute.xlu0 %1023
      %1026 = vset.pattern.permute.xlu0 6
      %1027 = vperm.xlu0 %1026, %v432
      %v1028 = vpop.permute.xlu0 %1027
      %1030 = vset.pattern.permute.xlu0 6
      %1031 = vperm.xlu0 %1030, %v433
      %v1032 = vpop.permute.xlu0 %1031
      %1034 = vset.pattern.permute.xlu0 6
      %1035 = vperm.xlu0 %1034, %v434
      %v1036 = vpop.permute.xlu0 %1035
      %1038 = vset.pattern.permute.xlu0 6
      %1039 = vperm.xlu0 %1038, %v435
      %v1040 = vpop.permute.xlu0 %1039
      %v1043 = vperm.slane %v1017, 0
      %v1044 = vperm.slane %v1017, 1
      %v1047 = vmul.f32 %v1020, %v1043
      %v1048 = vmul.f32 %v1020, %v1044
      %v1049 = vmul.f32 %v1024, %v1043
      %v1050 = vmul.f32 %v1024, %v1044
      %v1051 = vmul.f32 %v1028, %v1043
      %v1052 = vmul.f32 %v1028, %v1044
      %v1053 = vmul.f32 %v1032, %v1043
      %v1054 = vmul.f32 %v1032, %v1044
      %v1055 = vmul.f32 %v1036, %v1043
      %v1056 = vmul.f32 %v1036, %v1044
      %v1057 = vmul.f32 %v1040, %v1043
      %v1058 = vmul.f32 %v1040, %v1044
      %v1059 = vmul.f32 %v1004, %v1047
      %v1060 = vmul.f32 %v1010, %v1048
      %v1061 = vmul.f32 %v1005, %v1049
      %v1062 = vmul.f32 %v1011, %v1050
      %v1063 = vmul.f32 %v1006, %v1051
      %v1064 = vmul.f32 %v1012, %v1052
      %v1065 = vmul.f32 %v1007, %v1053
      %v1066 = vmul.f32 %v1013, %v1054
      %v1067 = vmul.f32 %v1008, %v1055
      %v1068 = vmul.f32 %v1014, %v1056
      %v1069 = vmul.f32 %v1009, %v1057
      %v1070 = vmul.f32 %v1015, %v1058
      %v1071 = vadd.f32 %v967, %v1059
      %v1072 = vadd.f32 %v968, %v1060
      %v1073 = vadd.f32 %v969, %v1061
      %v1074 = vadd.f32 %v970, %v1062
      %v1075 = vadd.f32 %v971, %v1063
      %v1076 = vadd.f32 %v972, %v1064
      %v1077 = vadd.f32 %v973, %v1065
      %v1078 = vadd.f32 %v974, %v1066
      %v1079 = vadd.f32 %v975, %v1067
      %v1080 = vadd.f32 %v976, %v1068
      %v1081 = vadd.f32 %v977, %v1069
      %v1082 = vadd.f32 %v978, %v1070
      %1083 = vrot.lane.b32.xlu0 %v353, 112
      %v1084 = vpop.permute.xlu0 %1083
      %1085 = vrot.lane.b32.xlu0 %v355, 112
      %v1086 = vpop.permute.xlu0 %1085
      %1087 = vrot.lane.b32.xlu0 %v358, 112
      %v1088 = vpop.permute.xlu0 %1087
      %1089 = vrot.lane.b32.xlu0 %v360, 112
      %v1090 = vpop.permute.xlu0 %1089
      %1091 = vrot.lane.b32.xlu0 %v363, 112
      %v1092 = vpop.permute.xlu0 %1091
      %1093 = vrot.lane.b32.xlu0 %v365, 112
      %v1094 = vpop.permute.xlu0 %1093
      %1095 = vrot.lane.b32.xlu0 %v377, 112
      %v1096 = vpop.permute.xlu0 %1095
      %1097 = vrot.lane.b32.xlu0 %v379, 112
      %v1098 = vpop.permute.xlu0 %1097
      %1099 = vrot.lane.b32.xlu0 %v382, 112
      %v1100 = vpop.permute.xlu0 %1099
      %1101 = vrot.lane.b32.xlu0 %v384, 112
      %v1102 = vpop.permute.xlu0 %1101
      %1103 = vrot.lane.b32.xlu0 %v387, 112
      %v1104 = vpop.permute.xlu0 %1103
      %1105 = vrot.lane.b32.xlu0 %v389, 112
      %v1106 = vpop.permute.xlu0 %1105
      %vm1107 = vcmp.lt.s32.totalorder %v416, 112
      %v1108 = vsel %vm1107, %v1084, %v1096
      %v1109 = vsel %vm1107, %v1086, %v1098
      %v1110 = vsel %vm1107, %v1088, %v1100
      %v1111 = vsel %vm1107, %v1090, %v1102
      %v1112 = vsel %vm1107, %v1092, %v1104
      %v1113 = vsel %vm1107, %v1094, %v1106
      %v1114 = vsel %vm1107, %v1096, %v1084
      %v1115 = vsel %vm1107, %v1098, %v1086
      %v1116 = vsel %vm1107, %v1100, %v1088
      %v1117 = vsel %vm1107, %v1102, %v1090
      %v1118 = vsel %vm1107, %v1104, %v1092
      %v1119 = vsel %vm1107, %v1106, %v1094
      %s1120 = scalar_lea.vmem %s6, 7
      %v1121 = vld [vmem:[%s1120] ss:$8 sm:$0x3]
      %1122 = vset.pattern.permute.xlu0 7
      %1123 = vperm.xlu0 %1122, %v430
      %v1124 = vpop.permute.xlu0 %1123
      %1126 = vset.pattern.permute.xlu0 7
      %1127 = vperm.xlu0 %1126, %v431
      %v1128 = vpop.permute.xlu0 %1127
      %1130 = vset.pattern.permute.xlu0 7
      %1131 = vperm.xlu0 %1130, %v432
      %v1132 = vpop.permute.xlu0 %1131
      %1134 = vset.pattern.permute.xlu0 7
      %1135 = vperm.xlu0 %1134, %v433
      %v1136 = vpop.permute.xlu0 %1135
      %1138 = vset.pattern.permute.xlu0 7
      %1139 = vperm.xlu0 %1138, %v434
      %v1140 = vpop.permute.xlu0 %1139
      %1142 = vset.pattern.permute.xlu0 7
      %1143 = vperm.xlu0 %1142, %v435
      %v1144 = vpop.permute.xlu0 %1143
      %v1147 = vperm.slane %v1121, 0
      %v1148 = vperm.slane %v1121, 1
      %v1151 = vmul.f32 %v1124, %v1147
      %v1152 = vmul.f32 %v1124, %v1148
      %v1153 = vmul.f32 %v1128, %v1147
      %v1154 = vmul.f32 %v1128, %v1148
      %v1155 = vmul.f32 %v1132, %v1147
      %v1156 = vmul.f32 %v1132, %v1148
      %v1157 = vmul.f32 %v1136, %v1147
      %v1158 = vmul.f32 %v1136, %v1148
      %v1159 = vmul.f32 %v1140, %v1147
      %v1160 = vmul.f32 %v1140, %v1148
      %v1161 = vmul.f32 %v1144, %v1147
      %v1162 = vmul.f32 %v1144, %v1148
      %v1163 = vmul.f32 %v1108, %v1151
      %v1164 = vmul.f32 %v1114, %v1152
      %v1165 = vmul.f32 %v1109, %v1153
      %v1166 = vmul.f32 %v1115, %v1154
      %v1167 = vmul.f32 %v1110, %v1155
      %v1168 = vmul.f32 %v1116, %v1156
      %v1169 = vmul.f32 %v1111, %v1157
      %v1170 = vmul.f32 %v1117, %v1158
      %v1171 = vmul.f32 %v1112, %v1159
      %v1172 = vmul.f32 %v1118, %v1160
      %v1173 = vmul.f32 %v1113, %v1161
      %v1174 = vmul.f32 %v1119, %v1162
      %v1175 = vadd.f32 %v1071, %v1163
      %v1176 = vadd.f32 %v1072, %v1164
      %v1177 = vadd.f32 %v1073, %v1165
      %v1178 = vadd.f32 %v1074, %v1166
      %v1179 = vadd.f32 %v1075, %v1167
      %v1180 = vadd.f32 %v1076, %v1168
      %v1181 = vadd.f32 %v1077, %v1169
      %v1182 = vadd.f32 %v1078, %v1170
      %v1183 = vadd.f32 %v1079, %v1171
      %v1184 = vadd.f32 %v1080, %v1172
      %v1185 = vadd.f32 %v1081, %v1173
      %v1186 = vadd.f32 %v1082, %v1174
      %1187 = vrot.lane.b32.xlu0 %v353, 111
      %v1188 = vpop.permute.xlu0 %1187
      %1189 = vrot.lane.b32.xlu0 %v355, 111
      %v1190 = vpop.permute.xlu0 %1189
      %1191 = vrot.lane.b32.xlu0 %v358, 111
      %v1192 = vpop.permute.xlu0 %1191
      %1193 = vrot.lane.b32.xlu0 %v360, 111
      %v1194 = vpop.permute.xlu0 %1193
      %1195 = vrot.lane.b32.xlu0 %v363, 111
      %v1196 = vpop.permute.xlu0 %1195
      %1197 = vrot.lane.b32.xlu0 %v365, 111
      %v1198 = vpop.permute.xlu0 %1197
      %1199 = vrot.lane.b32.xlu0 %v377, 111
      %v1200 = vpop.permute.xlu0 %1199
      %1201 = vrot.lane.b32.xlu0 %v379, 111
      %v1202 = vpop.permute.xlu0 %1201
      %1203 = vrot.lane.b32.xlu0 %v382, 111
      %v1204 = vpop.permute.xlu0 %1203
      %1205 = vrot.lane.b32.xlu0 %v384, 111
      %v1206 = vpop.permute.xlu0 %1205
      %1207 = vrot.lane.b32.xlu0 %v387, 111
      %v1208 = vpop.permute.xlu0 %1207
      %1209 = vrot.lane.b32.xlu0 %v389, 111
      %v1210 = vpop.permute.xlu0 %1209
      %vm1211 = vcmp.lt.s32.totalorder %v416, 111
      %v1212 = vsel %vm1211, %v1188, %v1200
      %v1213 = vsel %vm1211, %v1190, %v1202
      %v1214 = vsel %vm1211, %v1192, %v1204
      %v1215 = vsel %vm1211, %v1194, %v1206
      %v1216 = vsel %vm1211, %v1196, %v1208
      %v1217 = vsel %vm1211, %v1198, %v1210
      %v1218 = vsel %vm1211, %v1200, %v1188
      %v1219 = vsel %vm1211, %v1202, %v1190
      %v1220 = vsel %vm1211, %v1204, %v1192
      %v1221 = vsel %vm1211, %v1206, %v1194
      %v1222 = vsel %vm1211, %v1208, %v1196
      %v1223 = vsel %vm1211, %v1210, %v1198
      %s1224 = scalar_lea.vmem %s6, 16
      %v1225 = vld [vmem:[%s1224] ss:$8 sm:$0x3]
      %1226 = vset.pattern.permute.xlu0 8
      %1227 = vperm.xlu0 %1226, %v430
      %v1228 = vpop.permute.xlu0 %1227
      %1230 = vset.pattern.permute.xlu0 8
      %1231 = vperm.xlu0 %1230, %v431
      %v1232 = vpop.permute.xlu0 %1231
      %1234 = vset.pattern.permute.xlu0 8
      %1235 = vperm.xlu0 %1234, %v432
      %v1236 = vpop.permute.xlu0 %1235
      %1238 = vset.pattern.permute.xlu0 8
      %1239 = vperm.xlu0 %1238, %v433
      %v1240 = vpop.permute.xlu0 %1239
      %1242 = vset.pattern.permute.xlu0 8
      %1243 = vperm.xlu0 %1242, %v434
      %v1244 = vpop.permute.xlu0 %1243
      %1246 = vset.pattern.permute.xlu0 8
      %1247 = vperm.xlu0 %1246, %v435
      %v1248 = vpop.permute.xlu0 %1247
      %v1251 = vperm.slane %v1225, 0
      %v1252 = vperm.slane %v1225, 1
      %v1255 = vmul.f32 %v1228, %v1251
      %v1256 = vmul.f32 %v1228, %v1252
      %v1257 = vmul.f32 %v1232, %v1251
      %v1258 = vmul.f32 %v1232, %v1252
      %v1259 = vmul.f32 %v1236, %v1251
      %v1260 = vmul.f32 %v1236, %v1252
      %v1261 = vmul.f32 %v1240, %v1251
      %v1262 = vmul.f32 %v1240, %v1252
      %v1263 = vmul.f32 %v1244, %v1251
      %v1264 = vmul.f32 %v1244, %v1252
      %v1265 = vmul.f32 %v1248, %v1251
      %v1266 = vmul.f32 %v1248, %v1252
      %v1267 = vmul.f32 %v1212, %v1255
      %v1268 = vmul.f32 %v1218, %v1256
      %v1269 = vmul.f32 %v1213, %v1257
      %v1270 = vmul.f32 %v1219, %v1258
      %v1271 = vmul.f32 %v1214, %v1259
      %v1272 = vmul.f32 %v1220, %v1260
      %v1273 = vmul.f32 %v1215, %v1261
      %v1274 = vmul.f32 %v1221, %v1262
      %v1275 = vmul.f32 %v1216, %v1263
      %v1276 = vmul.f32 %v1222, %v1264
      %v1277 = vmul.f32 %v1217, %v1265
      %v1278 = vmul.f32 %v1223, %v1266
      %v1279 = vadd.f32 %v1175, %v1267
      %v1280 = vadd.f32 %v1176, %v1268
      %v1281 = vadd.f32 %v1177, %v1269
      %v1282 = vadd.f32 %v1178, %v1270
      %v1283 = vadd.f32 %v1179, %v1271
      %v1284 = vadd.f32 %v1180, %v1272
      %v1285 = vadd.f32 %v1181, %v1273
      %v1286 = vadd.f32 %v1182, %v1274
      %v1287 = vadd.f32 %v1183, %v1275
      %v1288 = vadd.f32 %v1184, %v1276
      %v1289 = vadd.f32 %v1185, %v1277
      %v1290 = vadd.f32 %v1186, %v1278
      %v1291 = vld [vmem:[%s3] sm:$0xf]
      %v1292 = vld [vmem:[%s3 + $0x4] sm:$0xf]
      %v1293 = vld [vmem:[%s3 + $0x8] sm:$0xf]
      %v1294 = vld [vmem:[%s3 + $0xc] sm:$0xf]
      %v1295 = vld [vmem:[%s3 + $0x10] sm:$0xf]
      %v1296 = vld [vmem:[%s3 + $0x14] sm:$0xf]
      %v1303 = vunpack.c.l.b16 %v1291
      %v1304 = vunpack.c.l.b16 %v1292
      %v1305 = vunpack.c.l.b16 %v1293
      %v1306 = vunpack.c.l.b16 %v1294
      %v1307 = vunpack.c.l.b16 %v1295
      %v1308 = vunpack.c.l.b16 %v1296
      %v1309 = vpack.c.b16 %v1304, %v1303
      %v1310 = vpack.c.b16 %v1306, %v1305
      %v1311 = vpack.c.b16 %v1308, %v1307
      %v1313 = vsel %vm333, %v1309, 0
      %v1316 = vsel %vm333, %v1310, 0
      %v1319 = vsel %vm333, %v1311, 0
      %1321 = vmatpush.bf16.msra.mxu0 0
      %1322 = vmatpush.bf16.msra.mxu0 0
      %1323 = vmatpush.bf16.msra.mxu0 0
      %1324 = vmatpush.bf16.msra.mxu0 0
      %1325 = vmatpush.bf16.msra.mxu0 0
      %1326 = vmatpush.bf16.msra.mxu0 0
      %1327 = vmatpush.bf16.msra.mxu0 0
      %1328 = vmatpush.bf16.msra.mxu0 %v310
      %1329 = vmatmul.bf16.gmra.mxu0 %v1313
      %v1330 = vpop.f32.mrf.mxu0
      %v1331 = vadd.f32 0.0, %v1330
      %v1332 = vpop.f32.mrf.mxu0
      %v1333 = vadd.f32 0.0, %v1332
      %1334 = vmatmul.bf16.gmra.mxu0 %v1316
      %v1335 = vpop.f32.mrf.mxu0
      %v1336 = vadd.f32 0.0, %v1335
      %v1337 = vpop.f32.mrf.mxu0
      %v1338 = vadd.f32 0.0, %v1337
      %1339 = vmatmul.bf16.gmra.mxu0 %v1319
      %v1340 = vpop.f32.mrf.mxu0
      %v1341 = vadd.f32 0.0, %v1340
      %v1342 = vpop.f32.mrf.mxu0
      %v1343 = vadd.f32 0.0, %v1342
      %1344 = vdwg.mxu0
      %1345 = vmatpush.bf16.msra.mxu0 0
      %1346 = vmatpush.bf16.msra.mxu0 0
      %1347 = vmatpush.bf16.msra.mxu0 0
      %1348 = vmatpush.bf16.msra.mxu0 0
      %1349 = vmatpush.bf16.msra.mxu0 0
      %1350 = vmatpush.bf16.msra.mxu0 0
      %1351 = vmatpush.bf16.msra.mxu0 0
      %1352 = vmatpush.bf16.msra.mxu0 %v311
      %1353 = vmatmul.bf16.gmra.mxu0 %v1313
      %v1354 = vpop.f32.mrf.mxu0
      %v1355 = vadd.f32 0.0, %v1354
      %v1356 = vpop.f32.mrf.mxu0
      %v1357 = vadd.f32 0.0, %v1356
      %1358 = vmatmul.bf16.gmra.mxu0 %v1316
      %v1359 = vpop.f32.mrf.mxu0
      %v1360 = vadd.f32 0.0, %v1359
      %v1361 = vpop.f32.mrf.mxu0
      %v1362 = vadd.f32 0.0, %v1361
      %1363 = vmatmul.bf16.gmra.mxu0 %v1319
      %v1364 = vpop.f32.mrf.mxu0
      %v1365 = vadd.f32 0.0, %v1364
      %v1366 = vpop.f32.mrf.mxu0
      %v1367 = vadd.f32 0.0, %v1366
      %1368 = vdwg.mxu0
      %v1369 = vmul.f32 %v1279, 0.70710677
      %v1370 = vmul.f32 %v1280, 0.70710677
      %v1371 = vmul.f32 %v1281, 0.70710677
      %v1372 = vmul.f32 %v1282, 0.70710677
      %v1373 = vmul.f32 %v1283, 0.70710677
      %v1374 = vmul.f32 %v1284, 0.70710677
      %v1375 = vmul.f32 %v1285, 0.70710677
      %v1376 = vmul.f32 %v1286, 0.70710677
      %v1377 = vmul.f32 %v1287, 0.70710677
      %v1378 = vmul.f32 %v1288, 0.70710677
      %v1379 = vmul.f32 %v1289, 0.70710677
      %v1380 = vmul.f32 %v1290, 0.70710677
      %v1381 = vand.u32 2147483647, %v1369
      %v1382 = vand.u32 2147483647, %v1370
      %v1383 = vand.u32 2147483647, %v1371
      %v1384 = vand.u32 2147483647, %v1372
      %v1385 = vand.u32 2147483647, %v1373
      %v1386 = vand.u32 2147483647, %v1374
      %v1387 = vand.u32 2147483647, %v1375
      %v1388 = vand.u32 2147483647, %v1376
      %v1389 = vand.u32 2147483647, %v1377
      %v1390 = vand.u32 2147483647, %v1378
      %v1391 = vand.u32 2147483647, %v1379
      %v1392 = vand.u32 2147483647, %v1380
      %v1393 = vmul.f32 %v1381, 0.3275911
      %v1394 = vmul.f32 %v1382, 0.3275911
      %v1395 = vmul.f32 %v1383, 0.3275911
      %v1396 = vmul.f32 %v1384, 0.3275911
      %v1397 = vmul.f32 %v1385, 0.3275911
      %v1398 = vmul.f32 %v1386, 0.3275911
      %v1399 = vmul.f32 %v1387, 0.3275911
      %v1400 = vmul.f32 %v1388, 0.3275911
      %v1401 = vmul.f32 %v1389, 0.3275911
      %v1402 = vmul.f32 %v1390, 0.3275911
      %v1403 = vmul.f32 %v1391, 0.3275911
      %v1404 = vmul.f32 %v1392, 0.3275911
      %v1405 = vadd.f32 %v1393, 1.0
      %v1406 = vadd.f32 %v1394, 1.0
      %v1407 = vadd.f32 %v1395, 1.0
      %v1408 = vadd.f32 %v1396, 1.0
      %v1409 = vadd.f32 %v1397, 1.0
      %v1410 = vadd.f32 %v1398, 1.0
      %v1411 = vadd.f32 %v1399, 1.0
      %v1412 = vadd.f32 %v1400, 1.0
      %v1413 = vadd.f32 %v1401, 1.0
      %v1414 = vadd.f32 %v1402, 1.0
      %v1415 = vadd.f32 %v1403, 1.0
      %v1416 = vadd.f32 %v1404, 1.0
      %v1417 = vrcp.pop %v1405
      %v1418 = vmul.f32 %v1405, %v1417
      %v1419 = vsub.f32 1.0, %v1418
      %v1420 = vmul.f32 %v1417, %v1419
      %v1421 = vadd.f32 %v1417, %v1420
      %vm1422 = vweird.f32 %v1405
      %vm1423 = vweird.f32 %v1417
      %vm1424 = vmor %vm1422, %vm1423
      %v1425 = vsel %vm1424, %v1417, %v1421
      %v1426 = vand.u32 2147483647, %v1405
      %vm1427 = vcmp.eq.f32.partialorder %v1426, 8.507059e+37
      %v1428 = vand.u32 %v1405, 2147483648
      %v1429 = vor.u32 1.1754944e-38, %v1428
      %v1430 = vsel %vm1427, %v1429, %v1425
      %v1431 = vmul.f32 1.0, %v1430
      %v1432 = vrcp.pop %v1406
      %v1433 = vmul.f32 %v1406, %v1432
      %v1434 = vsub.f32 1.0, %v1433
      %v1435 = vmul.f32 %v1432, %v1434
      %v1436 = vadd.f32 %v1432, %v1435
      %vm1437 = vweird.f32 %v1406
      %vm1438 = vweird.f32 %v1432
      %vm1439 = vmor %vm1437, %vm1438
      %v1440 = vsel %vm1439, %v1432, %v1436
      %v1441 = vand.u32 2147483647, %v1406
      %vm1442 = vcmp.eq.f32.partialorder %v1441, 8.507059e+37
      %v1443 = vand.u32 %v1406, 2147483648
      %v1444 = vor.u32 1.1754944e-38, %v1443
      %v1445 = vsel %vm1442, %v1444, %v1440
      %v1446 = vmul.f32 1.0, %v1445
      %v1447 = vrcp.pop %v1407
      %v1448 = vmul.f32 %v1407, %v1447
      %v1449 = vsub.f32 1.0, %v1448
      %v1450 = vmul.f32 %v1447, %v1449
      %v1451 = vadd.f32 %v1447, %v1450
      %vm1452 = vweird.f32 %v1407
      %vm1453 = vweird.f32 %v1447
      %vm1454 = vmor %vm1452, %vm1453
      %v1455 = vsel %vm1454, %v1447, %v1451
      %v1456 = vand.u32 2147483647, %v1407
      %vm1457 = vcmp.eq.f32.partialorder %v1456, 8.507059e+37
      %v1458 = vand.u32 %v1407, 2147483648
      %v1459 = vor.u32 1.1754944e-38, %v1458
      %v1460 = vsel %vm1457, %v1459, %v1455
      %v1461 = vmul.f32 1.0, %v1460
      %v1462 = vrcp.pop %v1408
      %v1463 = vmul.f32 %v1408, %v1462
      %v1464 = vsub.f32 1.0, %v1463
      %v1465 = vmul.f32 %v1462, %v1464
      %v1466 = vadd.f32 %v1462, %v1465
      %vm1467 = vweird.f32 %v1408
      %vm1468 = vweird.f32 %v1462
      %vm1469 = vmor %vm1467, %vm1468
      %v1470 = vsel %vm1469, %v1462, %v1466
      %v1471 = vand.u32 2147483647, %v1408
      %vm1472 = vcmp.eq.f32.partialorder %v1471, 8.507059e+37
      %v1473 = vand.u32 %v1408, 2147483648
      %v1474 = vor.u32 1.1754944e-38, %v1473
      %v1475 = vsel %vm1472, %v1474, %v1470
      %v1476 = vmul.f32 1.0, %v1475
      %v1477 = vrcp.pop %v1409
      %v1478 = vmul.f32 %v1409, %v1477
      %v1479 = vsub.f32 1.0, %v1478
      %v1480 = vmul.f32 %v1477, %v1479
      %v1481 = vadd.f32 %v1477, %v1480
      %vm1482 = vweird.f32 %v1409
      %vm1483 = vweird.f32 %v1477
      %vm1484 = vmor %vm1482, %vm1483
      %v1485 = vsel %vm1484, %v1477, %v1481
      %v1486 = vand.u32 2147483647, %v1409
      %vm1487 = vcmp.eq.f32.partialorder %v1486, 8.507059e+37
      %v1488 = vand.u32 %v1409, 2147483648
      %v1489 = vor.u32 1.1754944e-38, %v1488
      %v1490 = vsel %vm1487, %v1489, %v1485
      %v1491 = vmul.f32 1.0, %v1490
      %v1492 = vrcp.pop %v1410
      %v1493 = vmul.f32 %v1410, %v1492
      %v1494 = vsub.f32 1.0, %v1493
      %v1495 = vmul.f32 %v1492, %v1494
      %v1496 = vadd.f32 %v1492, %v1495
      %vm1497 = vweird.f32 %v1410
      %vm1498 = vweird.f32 %v1492
      %vm1499 = vmor %vm1497, %vm1498
      %v1500 = vsel %vm1499, %v1492, %v1496
      %v1501 = vand.u32 2147483647, %v1410
      %vm1502 = vcmp.eq.f32.partialorder %v1501, 8.507059e+37
      %v1503 = vand.u32 %v1410, 2147483648
      %v1504 = vor.u32 1.1754944e-38, %v1503
      %v1505 = vsel %vm1502, %v1504, %v1500
      %v1506 = vmul.f32 1.0, %v1505
      %v1507 = vrcp.pop %v1411
      %v1508 = vmul.f32 %v1411, %v1507
      %v1509 = vsub.f32 1.0, %v1508
      %v1510 = vmul.f32 %v1507, %v1509
      %v1511 = vadd.f32 %v1507, %v1510
      %vm1512 = vweird.f32 %v1411
      %vm1513 = vweird.f32 %v1507
      %vm1514 = vmor %vm1512, %vm1513
      %v1515 = vsel %vm1514, %v1507, %v1511
      %v1516 = vand.u32 2147483647, %v1411
      %vm1517 = vcmp.eq.f32.partialorder %v1516, 8.507059e+37
      %v1518 = vand.u32 %v1411, 2147483648
      %v1519 = vor.u32 1.1754944e-38, %v1518
      %v1520 = vsel %vm1517, %v1519, %v1515
      %v1521 = vmul.f32 1.0, %v1520
      %v1522 = vrcp.pop %v1412
      %v1523 = vmul.f32 %v1412, %v1522
      %v1524 = vsub.f32 1.0, %v1523
      %v1525 = vmul.f32 %v1522, %v1524
      %v1526 = vadd.f32 %v1522, %v1525
      %vm1527 = vweird.f32 %v1412
      %vm1528 = vweird.f32 %v1522
      %vm1529 = vmor %vm1527, %vm1528
      %v1530 = vsel %vm1529, %v1522, %v1526
      %v1531 = vand.u32 2147483647, %v1412
      %vm1532 = vcmp.eq.f32.partialorder %v1531, 8.507059e+37
      %v1533 = vand.u32 %v1412, 2147483648
      %v1534 = vor.u32 1.1754944e-38, %v1533
      %v1535 = vsel %vm1532, %v1534, %v1530
      %v1536 = vmul.f32 1.0, %v1535
      %v1537 = vrcp.pop %v1413
      %v1538 = vmul.f32 %v1413, %v1537
      %v1539 = vsub.f32 1.0, %v1538
      %v1540 = vmul.f32 %v1537, %v1539
      %v1541 = vadd.f32 %v1537, %v1540
      %vm1542 = vweird.f32 %v1413
      %vm1543 = vweird.f32 %v1537
      %vm1544 = vmor %vm1542, %vm1543
      %v1545 = vsel %vm1544, %v1537, %v1541
      %v1546 = vand.u32 2147483647, %v1413
      %vm1547 = vcmp.eq.f32.partialorder %v1546, 8.507059e+37
      %v1548 = vand.u32 %v1413, 2147483648
      %v1549 = vor.u32 1.1754944e-38, %v1548
      %v1550 = vsel %vm1547, %v1549, %v1545
      %v1551 = vmul.f32 1.0, %v1550
      %v1552 = vrcp.pop %v1414
      %v1553 = vmul.f32 %v1414, %v1552
      %v1554 = vsub.f32 1.0, %v1553
      %v1555 = vmul.f32 %v1552, %v1554
      %v1556 = vadd.f32 %v1552, %v1555
      %vm1557 = vweird.f32 %v1414
      %vm1558 = vweird.f32 %v1552
      %vm1559 = vmor %vm1557, %vm1558
      %v1560 = vsel %vm1559, %v1552, %v1556
      %v1561 = vand.u32 2147483647, %v1414
      %vm1562 = vcmp.eq.f32.partialorder %v1561, 8.507059e+37
      %v1563 = vand.u32 %v1414, 2147483648
      %v1564 = vor.u32 1.1754944e-38, %v1563
      %v1565 = vsel %vm1562, %v1564, %v1560
      %v1566 = vmul.f32 1.0, %v1565
      %v1567 = vrcp.pop %v1415
      %v1568 = vmul.f32 %v1415, %v1567
      %v1569 = vsub.f32 1.0, %v1568
      %v1570 = vmul.f32 %v1567, %v1569
      %v1571 = vadd.f32 %v1567, %v1570
      %vm1572 = vweird.f32 %v1415
      %vm1573 = vweird.f32 %v1567
      %vm1574 = vmor %vm1572, %vm1573
      %v1575 = vsel %vm1574, %v1567, %v1571
      %v1576 = vand.u32 2147483647, %v1415
      %vm1577 = vcmp.eq.f32.partialorder %v1576, 8.507059e+37
      %v1578 = vand.u32 %v1415, 2147483648
      %v1579 = vor.u32 1.1754944e-38, %v1578
      %v1580 = vsel %vm1577, %v1579, %v1575
      %v1581 = vmul.f32 1.0, %v1580
      %v1582 = vrcp.pop %v1416
      %v1583 = vmul.f32 %v1416, %v1582
      %v1584 = vsub.f32 1.0, %v1583
      %v1585 = vmul.f32 %v1582, %v1584
      %v1586 = vadd.f32 %v1582, %v1585
      %vm1587 = vweird.f32 %v1416
      %vm1588 = vweird.f32 %v1582
      %vm1589 = vmor %vm1587, %vm1588
      %v1590 = vsel %vm1589, %v1582, %v1586
      %v1591 = vand.u32 2147483647, %v1416
      %vm1592 = vcmp.eq.f32.partialorder %v1591, 8.507059e+37
      %v1593 = vand.u32 %v1416, 2147483648
      %v1594 = vor.u32 1.1754944e-38, %v1593
      %v1595 = vsel %vm1592, %v1594, %v1590
      %v1596 = vmul.f32 1.0, %v1595
      %v1597 = vmul.f32 %v1431, 1.0614054
      %v1598 = vmul.f32 %v1446, 1.0614054
      %v1599 = vmul.f32 %v1461, 1.0614054
      %v1600 = vmul.f32 %v1476, 1.0614054
      %v1601 = vmul.f32 %v1491, 1.0614054
      %v1602 = vmul.f32 %v1506, 1.0614054
      %v1603 = vmul.f32 %v1521, 1.0614054
      %v1604 = vmul.f32 %v1536, 1.0614054
      %v1605 = vmul.f32 %v1551, 1.0614054
      %v1606 = vmul.f32 %v1566, 1.0614054
      %v1607 = vmul.f32 %v1581, 1.0614054
      %v1608 = vmul.f32 %v1596, 1.0614054
      %v1609 = vsub.f32 %v1597, 1.4531521
      %v1610 = vsub.f32 %v1598, 1.4531521
      %v1611 = vsub.f32 %v1599, 1.4531521
      %v1612 = vsub.f32 %v1600, 1.4531521
      %v1613 = vsub.f32 %v1601, 1.4531521
      %v1614 = vsub.f32 %v1602, 1.4531521
      %v1615 = vsub.f32 %v1603, 1.4531521
      %v1616 = vsub.f32 %v1604, 1.4531521
      %v1617 = vsub.f32 %v1605, 1.4531521
      %v1618 = vsub.f32 %v1606, 1.4531521
      %v1619 = vsub.f32 %v1607, 1.4531521
      %v1620 = vsub.f32 %v1608, 1.4531521
      %v1621 = vmul.f32 %v1609, %v1431
      %v1622 = vmul.f32 %v1610, %v1446
      %v1623 = vmul.f32 %v1611, %v1461
      %v1624 = vmul.f32 %v1612, %v1476
      %v1625 = vmul.f32 %v1613, %v1491
      %v1626 = vmul.f32 %v1614, %v1506
      %v1627 = vmul.f32 %v1615, %v1521
      %v1628 = vmul.f32 %v1616, %v1536
      %v1629 = vmul.f32 %v1617, %v1551
      %v1630 = vmul.f32 %v1618, %v1566
      %v1631 = vmul.f32 %v1619, %v1581
      %v1632 = vmul.f32 %v1620, %v1596
      %v1633 = vadd.f32 %v1621, 1.4214138
      %v1634 = vadd.f32 %v1622, 1.4214138
      %v1635 = vadd.f32 %v1623, 1.4214138
      %v1636 = vadd.f32 %v1624, 1.4214138
      %v1637 = vadd.f32 %v1625, 1.4214138
      %v1638 = vadd.f32 %v1626, 1.4214138
      %v1639 = vadd.f32 %v1627, 1.4214138
      %v1640 = vadd.f32 %v1628, 1.4214138
      %v1641 = vadd.f32 %v1629, 1.4214138
      %v1642 = vadd.f32 %v1630, 1.4214138
      %v1643 = vadd.f32 %v1631, 1.4214138
      %v1644 = vadd.f32 %v1632, 1.4214138
      %v1645 = vmul.f32 %v1633, %v1431
      %v1646 = vmul.f32 %v1634, %v1446
      %v1647 = vmul.f32 %v1635, %v1461
      %v1648 = vmul.f32 %v1636, %v1476
      %v1649 = vmul.f32 %v1637, %v1491
      %v1650 = vmul.f32 %v1638, %v1506
      %v1651 = vmul.f32 %v1639, %v1521
      %v1652 = vmul.f32 %v1640, %v1536
      %v1653 = vmul.f32 %v1641, %v1551
      %v1654 = vmul.f32 %v1642, %v1566
      %v1655 = vmul.f32 %v1643, %v1581
      %v1656 = vmul.f32 %v1644, %v1596
      %v1657 = vsub.f32 %v1645, 0.28449672
      %v1658 = vsub.f32 %v1646, 0.28449672
      %v1659 = vsub.f32 %v1647, 0.28449672
      %v1660 = vsub.f32 %v1648, 0.28449672
      %v1661 = vsub.f32 %v1649, 0.28449672
      %v1662 = vsub.f32 %v1650, 0.28449672
      %v1663 = vsub.f32 %v1651, 0.28449672
      %v1664 = vsub.f32 %v1652, 0.28449672
      %v1665 = vsub.f32 %v1653, 0.28449672
      %v1666 = vsub.f32 %v1654, 0.28449672
      %v1667 = vsub.f32 %v1655, 0.28449672
      %v1668 = vsub.f32 %v1656, 0.28449672
      %v1669 = vmul.f32 %v1657, %v1431
      %v1670 = vmul.f32 %v1658, %v1446
      %v1671 = vmul.f32 %v1659, %v1461
      %v1672 = vmul.f32 %v1660, %v1476
      %v1673 = vmul.f32 %v1661, %v1491
      %v1674 = vmul.f32 %v1662, %v1506
      %v1675 = vmul.f32 %v1663, %v1521
      %v1676 = vmul.f32 %v1664, %v1536
      %v1677 = vmul.f32 %v1665, %v1551
      %v1678 = vmul.f32 %v1666, %v1566
      %v1679 = vmul.f32 %v1667, %v1581
      %v1680 = vmul.f32 %v1668, %v1596
      %v1681 = vadd.f32 %v1669, 0.2548296
      %v1682 = vadd.f32 %v1670, 0.2548296
      %v1683 = vadd.f32 %v1671, 0.2548296
      %v1684 = vadd.f32 %v1672, 0.2548296
      %v1685 = vadd.f32 %v1673, 0.2548296
      %v1686 = vadd.f32 %v1674, 0.2548296
      %v1687 = vadd.f32 %v1675, 0.2548296
      %v1688 = vadd.f32 %v1676, 0.2548296
      %v1689 = vadd.f32 %v1677, 0.2548296
      %v1690 = vadd.f32 %v1678, 0.2548296
      %v1691 = vadd.f32 %v1679, 0.2548296
      %v1692 = vadd.f32 %v1680, 0.2548296
      %v1693 = vmul.f32 %v1681, %v1431
      %v1694 = vmul.f32 %v1682, %v1446
      %v1695 = vmul.f32 %v1683, %v1461
      %v1696 = vmul.f32 %v1684, %v1476
      %v1697 = vmul.f32 %v1685, %v1491
      %v1698 = vmul.f32 %v1686, %v1506
      %v1699 = vmul.f32 %v1687, %v1521
      %v1700 = vmul.f32 %v1688, %v1536
      %v1701 = vmul.f32 %v1689, %v1551
      %v1702 = vmul.f32 %v1690, %v1566
      %v1703 = vmul.f32 %v1691, %v1581
      %v1704 = vmul.f32 %v1692, %v1596
      %v1705 = vsub.f32 0.0, %v1381
      %v1706 = vsub.f32 0.0, %v1382
      %v1707 = vsub.f32 0.0, %v1383
      %v1708 = vsub.f32 0.0, %v1384
      %v1709 = vsub.f32 0.0, %v1385
      %v1710 = vsub.f32 0.0, %v1386
      %v1711 = vsub.f32 0.0, %v1387
      %v1712 = vsub.f32 0.0, %v1388
      %v1713 = vsub.f32 0.0, %v1389
      %v1714 = vsub.f32 0.0, %v1390
      %v1715 = vsub.f32 0.0, %v1391
      %v1716 = vsub.f32 0.0, %v1392
      %v1717 = vmul.f32 %v1705, %v1381
      %v1718 = vmul.f32 %v1706, %v1382
      %v1719 = vmul.f32 %v1707, %v1383
      %v1720 = vmul.f32 %v1708, %v1384
      %v1721 = vmul.f32 %v1709, %v1385
      %v1722 = vmul.f32 %v1710, %v1386
      %v1723 = vmul.f32 %v1711, %v1387
      %v1724 = vmul.f32 %v1712, %v1388
      %v1725 = vmul.f32 %v1713, %v1389
      %v1726 = vmul.f32 %v1714, %v1390
      %v1727 = vmul.f32 %v1715, %v1391
      %v1728 = vmul.f32 %v1716, %v1392
      %v1729 = vmul.f32 %v1717, 1.442695
      %v1730 = vpow.pop %v1729
      %v1731 = vmul.f32 %v1718, 1.442695
      %v1732 = vpow.pop %v1731
      %v1733 = vmul.f32 %v1719, 1.442695
      %v1734 = vpow.pop %v1733
      %v1735 = vmul.f32 %v1720, 1.442695
      %v1736 = vpow.pop %v1735
      %v1737 = vmul.f32 %v1721, 1.442695
      %v1738 = vpow.pop %v1737
      %v1739 = vmul.f32 %v1722, 1.442695
      %v1740 = vpow.pop %v1739
      %v1741 = vmul.f32 %v1723, 1.442695
      %v1742 = vpow.pop %v1741
      %v1743 = vmul.f32 %v1724, 1.442695
      %v1744 = vpow.pop %v1743
      %v1745 = vmul.f32 %v1725, 1.442695
      %v1746 = vpow.pop %v1745
      %v1747 = vmul.f32 %v1726, 1.442695
      %v1748 = vpow.pop %v1747
      %v1749 = vmul.f32 %v1727, 1.442695
      %v1750 = vpow.pop %v1749
      %v1751 = vmul.f32 %v1728, 1.442695
      %v1752 = vpow.pop %v1751
      %v1753 = vmul.f32 %v1693, %v1730
      %v1754 = vmul.f32 %v1694, %v1732
      %v1755 = vmul.f32 %v1695, %v1734
      %v1756 = vmul.f32 %v1696, %v1736
      %v1757 = vmul.f32 %v1697, %v1738
      %v1758 = vmul.f32 %v1698, %v1740
      %v1759 = vmul.f32 %v1699, %v1742
      %v1760 = vmul.f32 %v1700, %v1744
      %v1761 = vmul.f32 %v1701, %v1746
      %v1762 = vmul.f32 %v1702, %v1748
      %v1763 = vmul.f32 %v1703, %v1750
      %v1764 = vmul.f32 %v1704, %v1752
      %v1765 = vsub.f32 1.0, %v1753
      %v1766 = vsub.f32 1.0, %v1754
      %v1767 = vsub.f32 1.0, %v1755
      %v1768 = vsub.f32 1.0, %v1756
      %v1769 = vsub.f32 1.0, %v1757
      %v1770 = vsub.f32 1.0, %v1758
      %v1771 = vsub.f32 1.0, %v1759
      %v1772 = vsub.f32 1.0, %v1760
      %v1773 = vsub.f32 1.0, %v1761
      %v1774 = vsub.f32 1.0, %v1762
      %v1775 = vsub.f32 1.0, %v1763
      %v1776 = vsub.f32 1.0, %v1764
      %vm1777 = vcmp.lt.f32.partialorder %v1369, 0.0
      %vm1778 = vcmp.lt.f32.partialorder %v1370, 0.0
      %vm1779 = vcmp.lt.f32.partialorder %v1371, 0.0
      %vm1780 = vcmp.lt.f32.partialorder %v1372, 0.0
      %vm1781 = vcmp.lt.f32.partialorder %v1373, 0.0
      %vm1782 = vcmp.lt.f32.partialorder %v1374, 0.0
      %vm1783 = vcmp.lt.f32.partialorder %v1375, 0.0
      %vm1784 = vcmp.lt.f32.partialorder %v1376, 0.0
      %vm1785 = vcmp.lt.f32.partialorder %v1377, 0.0
      %vm1786 = vcmp.lt.f32.partialorder %v1378, 0.0
      %vm1787 = vcmp.lt.f32.partialorder %v1379, 0.0
      %vm1788 = vcmp.lt.f32.partialorder %v1380, 0.0
      %v1789 = vsub.f32 0.0, %v1765
      %v1790 = vsub.f32 0.0, %v1766
      %v1791 = vsub.f32 0.0, %v1767
      %v1792 = vsub.f32 0.0, %v1768
      %v1793 = vsub.f32 0.0, %v1769
      %v1794 = vsub.f32 0.0, %v1770
      %v1795 = vsub.f32 0.0, %v1771
      %v1796 = vsub.f32 0.0, %v1772
      %v1797 = vsub.f32 0.0, %v1773
      %v1798 = vsub.f32 0.0, %v1774
      %v1799 = vsub.f32 0.0, %v1775
      %v1800 = vsub.f32 0.0, %v1776
      %v1801 = vsel %vm1777, %v1789, %v1765
      %v1802 = vsel %vm1778, %v1790, %v1766
      %v1803 = vsel %vm1779, %v1791, %v1767
      %v1804 = vsel %vm1780, %v1792, %v1768
      %v1805 = vsel %vm1781, %v1793, %v1769
      %v1806 = vsel %vm1782, %v1794, %v1770
      %v1807 = vsel %vm1783, %v1795, %v1771
      %v1808 = vsel %vm1784, %v1796, %v1772
      %v1809 = vsel %vm1785, %v1797, %v1773
      %v1810 = vsel %vm1786, %v1798, %v1774
      %v1811 = vsel %vm1787, %v1799, %v1775
      %v1812 = vsel %vm1788, %v1800, %v1776
      %v1813 = vmul.f32 %v1279, 0.5
      %v1814 = vmul.f32 %v1280, 0.5
      %v1815 = vmul.f32 %v1281, 0.5
      %v1816 = vmul.f32 %v1282, 0.5
      %v1817 = vmul.f32 %v1283, 0.5
      %v1818 = vmul.f32 %v1284, 0.5
      %v1819 = vmul.f32 %v1285, 0.5
      %v1820 = vmul.f32 %v1286, 0.5
      %v1821 = vmul.f32 %v1287, 0.5
      %v1822 = vmul.f32 %v1288, 0.5
      %v1823 = vmul.f32 %v1289, 0.5
      %v1824 = vmul.f32 %v1290, 0.5
      %v1825 = vadd.f32 %v1801, 1.0
      %v1826 = vadd.f32 %v1802, 1.0
      %v1827 = vadd.f32 %v1803, 1.0
      %v1828 = vadd.f32 %v1804, 1.0
      %v1829 = vadd.f32 %v1805, 1.0
      %v1830 = vadd.f32 %v1806, 1.0
      %v1831 = vadd.f32 %v1807, 1.0
      %v1832 = vadd.f32 %v1808, 1.0
      %v1833 = vadd.f32 %v1809, 1.0
      %v1834 = vadd.f32 %v1810, 1.0
      %v1835 = vadd.f32 %v1811, 1.0
      %v1836 = vadd.f32 %v1812, 1.0
      %v1837 = vmul.f32 %v1813, %v1825
      %v1838 = vmul.f32 %v1814, %v1826
      %v1839 = vmul.f32 %v1815, %v1827
      %v1840 = vmul.f32 %v1816, %v1828
      %v1841 = vmul.f32 %v1817, %v1829
      %v1842 = vmul.f32 %v1818, %v1830
      %v1843 = vmul.f32 %v1819, %v1831
      %v1844 = vmul.f32 %v1820, %v1832
      %v1845 = vmul.f32 %v1821, %v1833
      %v1846 = vmul.f32 %v1822, %v1834
      %v1847 = vmul.f32 %v1823, %v1835
      %v1848 = vmul.f32 %v1824, %v1836
      %v1849 = vmul.f32 %v1837, %v1331
      %v1850 = vmul.f32 %v1838, %v1355
      %v1851 = vmul.f32 %v1839, %v1333
      %v1852 = vmul.f32 %v1840, %v1357
      %v1853 = vmul.f32 %v1841, %v1336
      %v1854 = vmul.f32 %v1842, %v1360
      %v1855 = vmul.f32 %v1843, %v1338
      %v1856 = vmul.f32 %v1844, %v1362
      %v1857 = vmul.f32 %v1845, %v1341
      %v1858 = vmul.f32 %v1846, %v1365
      %v1859 = vmul.f32 %v1847, %v1343
      %v1860 = vmul.f32 %v1848, %v1367
      %v1861 = vpack.c.bf16 %v1851, %v1849
      %v1862 = vpack.c.bf16 %v1852, %v1850
      %v1863 = vpack.c.bf16 %v1855, %v1853
      %v1864 = vpack.c.bf16 %v1856, %v1854
      %v1865 = vpack.c.bf16 %v1859, %v1857
      %v1866 = vpack.c.bf16 %v1860, %v1858
      %v1867 = vld [vmem:[%s4] sm:$0xf]
      %v1868 = vld [vmem:[%s4 + $0x4] sm:$0xf]
      %v1871 = vunpack.c.l.b16 %v1867
      %v1872 = vunpack.c.l.b16 %v1868
      %v1873 = vpack.c.b16 %v1872, %v1871
      %vm1874 = vcmask 392192
      %v1876 = vsel %vm1874, %v1873, 0
      %1878 = vmatpush.bf16.msra.mxu0 0
      %1879 = vmatpush.bf16.msra.mxu0 0
      %1880 = vmatpush.bf16.msra.mxu0 0
      %1881 = vmatpush.bf16.msra.mxu0 0
      %1882 = vmatpush.bf16.msra.mxu0 0
      %1883 = vmatpush.bf16.msra.mxu0 %v1865
      %1884 = vmatpush.bf16.msra.mxu0 %v1863
      %1885 = vmatpush.bf16.msra.mxu0 %v1861
      %1886 = vmatmul.bf16.gmra.mxu0 %v1876
      %v1887 = vpop.f32.mrf.mxu0
      %v1888 = vadd.f32 0.0, %v1887
      %v1889 = vpop.f32.mrf.mxu0
      %v1890 = vadd.f32 0.0, %v1889
      %1891 = vdwg.mxu0
      %1892 = vmatpush.bf16.msra.mxu0 0
      %1893 = vmatpush.bf16.msra.mxu0 0
      %1894 = vmatpush.bf16.msra.mxu0 0
      %1895 = vmatpush.bf16.msra.mxu0 0
      %1896 = vmatpush.bf16.msra.mxu0 0
      %1897 = vmatpush.bf16.msra.mxu0 %v1866
      %1898 = vmatpush.bf16.msra.mxu0 %v1864
      %1899 = vmatpush.bf16.msra.mxu0 %v1862
      %1900 = vmatmul.bf16.gmra.mxu0 %v1876
      %v1901 = vpop.f32.mrf.mxu0
      %v1902 = vadd.f32 0.0, %v1901
      %v1903 = vpop.f32.mrf.mxu0
      %v1904 = vadd.f32 0.0, %v1903
      %1905 = vdwg.mxu0
      %1906 = vst [vmem:[%s298] sm:$0xff] %v1888
      %1907 = vst [vmem:[%s298 + $0x8] sm:$0xff] %v1902
      %1908 = vst [vmem:[%s298 + $0x10] sm:$0xff] %v1890
      %1909 = vst [vmem:[%s298 + $0x18] sm:$0xff] %v1904
      %p1910 = scmp.lt.s32.totalorder %s18, 1
      %s1911 = scalar_select %p1910, %s18, 1
      %s1912 = smul.addr %s1911, 4
      %s1913 = smul.addr %s1912, 8
      %s1914 = scalar_lea.vmem %s7, %s1913
      // Predicated region
      $region49: #{_lambda_.1} parent=47 // pred_check
        %p1915 = pneg %p193
      $region50: #{_lambda_.1} parent=47 // pred_check_branch
        %1917 = sbr.rel (%p1915) target = $region52
      $region51: #{_lambda_.1} parent=47 // pred_region
        _
      $region52: #{_lambda_.1} parent=47 // pred_fallthru
        _
    $region48: #{_lambda_.1} parent=5 // pred_fallthru
      _
    %p1918 = scmp.le.s32.totalorder 2, %s13
    // Predicated region
    $region53: #{_lambda_.1} parent=5 // pred_check
      %p1919 = pneg %p1918
    $region54: #{_lambda_.1} parent=5 // pred_check_branch
      %1921 = sbr.rel (%p1919) target = $region56
    $region55: #{_lambda_.1} parent=5 // pred_region
      %s1922 = ssub.s32 %s13, 2
      // Predicated region
      $region57: #{_lambda_.1} parent=55 // pred_check
        %p1923 = pneg %p199
      $region58: #{_lambda_.1} parent=55 // pred_check_branch
        %1925 = sbr.rel (%p1923) target = $region60
      $region59: #{_lambda_.1} parent=55 // pred_region
        %p1926 = scmp.lt.s32.totalorder %s19, 1
        %s1927 = scalar_select %p1926, %s19, 1
        %s1928 = smul.addr %s1927, 4
        %s1929 = smul.addr %s1928, 8
        %s1930 = scalar_lea.vmem %s7, %s1929
      $region60: #{_lambda_.1} parent=55 // pred_fallthru
        _
    $region56: #{_lambda_.1} parent=5 // pred_fallthru
      _
  $region6: #{_lambda_.1} parent=0 // loop_footer
    %s17 = sadd.s32 1, %s13
  $region7: #{_lambda_.1} parent=0 // loop_footer_branch
    %12 = sbr.rel target = $region3
  $region8: #{_lambda_.1} parent=0 // loop_exit
    _

</llo_original>
